<compile_context>
chip_gen: v7x
topology: tpu7x:2x2x1
jax: 0.10.0
libtpu: 0.0.40
codegen_flags: <defaults>
</compile_context>

<pallas_src>
import functools
import numpy as np
import jax
import jax.numpy as jnp
from jax.experimental import pallas as pl
from jax.experimental.pallas import tpu as pltpu

LANE = 128
SUBLANE = 8
NEG_BIG = np.float32(-3.0e38)   # "minus infinity" for the padded softmax lanes


def _round_up(n, m):
    return ((n + m - 1) // m) * m


# ----------------------------- kernel ----------------------------------------

def mlp_kernel(x_ref,
               w1_ref, b1_ref,
               w2_ref, b2_ref,
               w3_ref, b3_ref,
               w4_ref, b4_ref,
               w5_ref, b5_ref,
               o_ref, *, approx_recip):
    """One batch tile: 5 Linear layers (f32 MXU accumulation), tanh x4,
    softmax over dim=1.  The softmax lane mask is baked into the last-layer
    bias (padded columns == NEG_BIG => exp underflows to exactly 0), so no
    iota/compare/select is needed in the kernel."""
    in_dtype = w1_ref.dtype   # MXU input dtype (f32 or bf16)

    def layer(h, w_ref, b_ref, act):
        y = jnp.dot(h.astype(in_dtype), w_ref[...],
                    preferred_element_type=jnp.float32)
        y = y + b_ref[...].astype(jnp.float32)      # (1, N) broadcast over tile
        return jnp.tanh(y) if act else y

    h = layer(x_ref[...], w1_ref, b1_ref, True)
    h = layer(h, w2_ref, b2_ref, True)
    h = layer(h, w3_ref, b3_ref, True)
    h = layer(h, w4_ref, b4_ref, True)
    logits = layer(h, w5_ref, b5_ref, False)        # (TB, OUT_P) f32

    m = jnp.max(logits, axis=1, keepdims=True)      # max of the real lanes
    e = jnp.exp(logits - m)                         # padded lanes -> exactly 0
    denom = jnp.sum(e, axis=1, keepdims=True)
    o_ref[...] = (e * pl.reciprocal(denom, approx=approx_recip)).astype(o_ref.dtype)


# ----------------------------- param prep -------------------------------------

def prepare_params(params, dtype=jnp.float32):
    """Zero-pad every OUTPUT feature dim to a multiple of 128 (lane-dense MXU
    feeds / stores) and cast to `dtype` (bf16 for the MXU fast path, f32 for
    exact validation).  The FIRST layer keeps K = input_size unpadded so x can
    be read from HBM without lane padding.  The LAST layer's padded bias
    columns are NEG_BIG so the softmax mask comes for free."""
    padded = []
    n = len(params)
    for idx, (W, b) in enumerate(params):
        fi, fo = W.shape
        fi_p = fi if idx == 0 else _round_up(fi, LANE)
        fo_p = _round_up(fo, LANE)
        Wp = jnp.zeros((fi_p, fo_p), dtype).at[:fi, :fo].set(W.astype(dtype))
        pad_bias = NEG_BIG if idx == n - 1 else 0.0
        bp = jnp.full((1, fo_p), pad_bias, dtype).at[:, :fo].set(
            b.reshape(1, -1).astype(dtype))
        padded.append((Wp, bp))
    return padded


# ----------------------------- wrapper ----------------------------------------

def old_model_dnn_forward(x, padded_params, out_dim, *,
                          block_batch=2048, out_dtype=jnp.float32):
    """x: (batch, in_features). padded_params: output of prepare_params."""
    batch, in_dim = x.shape
    assert padded_params[0][0].shape[0] == in_dim, "W1 K-dim must match x"
    w_dtype = padded_params[0][0].dtype
    out_p = padded_params[-1][0].shape[1]
    approx_recip = bool(w_dtype == jnp.bfloat16)

    # ---- batch tiling --------------------------------------------------------
    batch_r = _round_up(batch, SUBLANE)
    tb = _round_up(min(block_batch, batch_r), SUBLANE)
    if batch_r >= 2 * SUBLANE:
        # keep >= 2 grid steps so v7x's second TensorCore gets work
        tb = min(tb, _round_up(pl.cdiv(batch_r, 2), SUBLANE))
    batch_p = _round_up(batch, tb)
    grid = (batch_p // tb,)

    # only the batch dim is padded (if needed); feature dim & dtype untouched
    x_in = x if batch_p == batch else jnp.pad(x, ((0, batch_p - batch), (0, 0)))

    flat_params = [p for Wb in padded_params for p in Wb]

    def build_specs(single_buffer_weights):
        wkw = {}
        if single_buffer_weights and hasattr(pl, "Buffered"):
            # constant-index resident operands: one buffer is enough
            wkw = dict(pipeline_mode=pl.Buffered(1))
        in_specs = [pl.BlockSpec((tb, in_dim), lambda i: (i, 0))]
        for W, b in padded_params:
            in_specs.append(pl.BlockSpec(W.shape, lambda i: (0, 0), **wkw))
            in_specs.append(pl.BlockSpec(b.shape, lambda i: (0, 0), **wkw))
        out_spec = pl.BlockSpec((tb, out_p), lambda i: (i, 0))
        return in_specs, out_spec

    # advisory cost estimate for XLA scheduling
    flops = 2 * batch_p * sum(int(W.shape[0]) * int(W.shape[1])
                              for W, _ in padded_params)
    hidden_total = sum(int(W.shape[1]) for W, _ in padded_params[:-1])
    transcendentals = batch_p * (hidden_total + out_p)
    bytes_accessed = (x_in.size * x_in.dtype.itemsize
                      + sum(W.size * W.dtype.itemsize + b.size * b.dtype.itemsize
                            for W, b in padded_params)
                      + batch_p * out_p * jnp.dtype(out_dtype).itemsize)

    def run(single_buffer_weights):
        in_specs, out_spec = build_specs(single_buffer_weights)
        return pl.pallas_call(
            functools.partial(mlp_kernel, approx_recip=approx_recip),
            out_shape=jax.ShapeDtypeStruct((batch_p, out_p), out_dtype),
            grid=grid,
            in_specs=in_specs,
            out_specs=out_spec,
            compiler_params=pltpu.CompilerParams(
                dimension_semantics=("parallel",),
                vmem_limit_bytes=32 * 1024 * 1024),
            cost_estimate=pl.CostEstimate(flops=flops,
                                          transcendentals=transcendentals,
                                          bytes_accessed=bytes_accessed),
        )(x_in, *flat_params)

    try:
        out_padded = run(True)
    except Exception:
        # pipeline_mode=Buffered(1) unsupported in this build -> default
        # double-buffering (costs ~0.3 MiB of VMEM; perf-neutral here).
        out_padded = run(False)

    # TODO(synk): fuse this slice into the consumer / donate the buffer instead
    # of materialising a separate sliced copy of the padded output slab.
    return out_padded[:batch, :out_dim]


# ----------------------------- init / reference -------------------------------

def init_params(key, input_size, output_size):
    sizes = [
        input_size,
        int(np.floor(4 * input_size / 5)),
        int(np.floor(3 * input_size / 5)),
        int(np.floor(2 * input_size / 5)),
        int(np.floor(input_size / 5)),
        output_size,
    ]
    params = []
    for i in range(5):
        fan_in, fan_out = sizes[i], sizes[i + 1]
        key, kw, kb = jax.random.split(key, 3)
        bound = 1.0 / np.sqrt(fan_in)  # matches nn.Linear default init range
        W = jax.random.uniform(kw, (fan_in, fan_out), jnp.float32, -bound, bound)
        b = jax.random.uniform(kb, (1, fan_out), jnp.float32, -bound, bound)
        params.append((W, b))
    return params


def reference_forward(x, params):
    h = x
    for i, (W, b) in enumerate(params):
        h = h @ W + b
        if i < 4:
            h = jnp.tanh(h)
    return jax.nn.softmax(h, axis=1)


# ----------------------------- main -------------------------------------------

if __name__ == "__main__":
    input_size = 20      # hidden sizes 16, 12, 8, 4
    output_size = 5
    batch = 8

    key = jax.random.PRNGKey(0)
    key, kx = jax.random.split(key)
    x = jax.random.normal(kx, (batch, input_size), jnp.float32)
    params = init_params(key, input_size, output_size)

    ref = reference_forward(x, params)

    # f32 path: must match the PyTorch/JAX reference tightly.
    out_f32 = old_model_dnn_forward(
        x, prepare_params(params, jnp.float32), output_size,
        out_dtype=jnp.float32)
    out_f32 = jax.block_until_ready(out_f32)
    np.testing.assert_allclose(np.asarray(out_f32), np.asarray(ref),
                               rtol=1e-5, atol=1e-5)

    # bf16 weights / bf16 output (MXU fast path), f32 accumulate + f32 softmax.
    out_bf16 = old_model_dnn_forward(
        x, prepare_params(params, jnp.bfloat16), output_size,
        out_dtype=jnp.bfloat16)
    out_bf16 = jax.block_until_ready(out_bf16)
    np.testing.assert_allclose(np.asarray(out_bf16.astype(jnp.float32)),
                               np.asarray(ref), rtol=5e-2, atol=5e-2)

    print("KERNEL_OK")
</pallas_src>

<mosaic_0001>
module attributes {stable_mosaic.version = 11 : i64} {
  func.func @mlp_kernel(%arg0: i32, %arg1: memref<8x20xf32, #tpu.memory_space<vmem>>, %arg2: memref<20x128xf32, #tpu.memory_space<vmem>>, %arg3: memref<1x128xf32, #tpu.memory_space<vmem>>, %arg4: memref<128x128xf32, #tpu.memory_space<vmem>>, %arg5: memref<1x128xf32, #tpu.memory_space<vmem>>, %arg6: memref<128x128xf32, #tpu.memory_space<vmem>>, %arg7: memref<1x128xf32, #tpu.memory_space<vmem>>, %arg8: memref<128x128xf32, #tpu.memory_space<vmem>>, %arg9: memref<1x128xf32, #tpu.memory_space<vmem>>, %arg10: memref<128x128xf32, #tpu.memory_space<vmem>>, %arg11: memref<1x128xf32, #tpu.memory_space<vmem>>, %arg12: memref<8x128xf32, #tpu.memory_space<vmem>>) attributes {dimension_semantics = [#tpu.dimension_semantics<parallel>], iteration_bounds = array<i64: 1>, scalar_prefetch = 0 : i64, scratch_operands = 0 : i64, tpu.core_type = #tpu.core_type<tc>, window_params = [{transform_indices = @transform_0, window_bounds = array<i64: 8, 20>}, {pipeline_mode = #tpu.pipeline_mode<synchronous>, transform_indices = @transform_1, window_bounds = array<i64: 20, 128>}, {pipeline_mode = #tpu.pipeline_mode<synchronous>, transform_indices = @transform_2, window_bounds = array<i64: 1, 128>}, {pipeline_mode = #tpu.pipeline_mode<synchronous>, transform_indices = @transform_3, window_bounds = array<i64: 128, 128>}, {pipeline_mode = #tpu.pipeline_mode<synchronous>, transform_indices = @transform_4, window_bounds = array<i64: 1, 128>}, {pipeline_mode = #tpu.pipeline_mode<synchronous>, transform_indices = @transform_5, window_bounds = array<i64: 128, 128>}, {pipeline_mode = #tpu.pipeline_mode<synchronous>, transform_indices = @transform_6, window_bounds = array<i64: 1, 128>}, {pipeline_mode = #tpu.pipeline_mode<synchronous>, transform_indices = @transform_7, window_bounds = array<i64: 128, 128>}, {pipeline_mode = #tpu.pipeline_mode<synchronous>, transform_indices = @transform_8, window_bounds = array<i64: 1, 128>}, {pipeline_mode = #tpu.pipeline_mode<synchronous>, transform_indices = @transform_9, window_bounds = array<i64: 128, 128>}, {pipeline_mode = #tpu.pipeline_mode<synchronous>, transform_indices = @transform_10, window_bounds = array<i64: 1, 128>}, {transform_indices = @transform_11, window_bounds = array<i64: 8, 128>}]} {
    %c0 = arith.constant 0 : index
    %c0_0 = arith.constant 0 : index
    %0 = vector.load %arg1[%c0, %c0_0] : memref<8x20xf32, #tpu.memory_space<vmem>>, vector<8x20xf32>
    %c0_1 = arith.constant 0 : index
    %c0_2 = arith.constant 0 : index
    %1 = vector.load %arg2[%c0_1, %c0_2] : memref<20x128xf32, #tpu.memory_space<vmem>>, vector<20x128xf32>
    %cst = arith.constant dense<0.000000e+00> : vector<8x128xf32>
    %2 = tpu.matmul %0, %1, %cst {dimension_numbers = #tpu.dot_dimension_numbers<[1], [0], [0], [1], [0, 0, 1, 1], [], []>} : vector<8x20xf32>, vector<20x128xf32>, vector<8x128xf32> -> vector<8x128xf32>
    %c0_3 = arith.constant 0 : index
    %c0_4 = arith.constant 0 : index
    %3 = vector.load %arg3[%c0_3, %c0_4] : memref<1x128xf32, #tpu.memory_space<vmem>>, vector<1x128xf32>
    %4 = vector.broadcast %3 : vector<1x128xf32> to vector<8x128xf32>
    %5 = arith.addf %2, %4 : vector<8x128xf32>
    %6 = math.tanh %5 : vector<8x128xf32>
    %c0_5 = arith.constant 0 : index
    %c0_6 = arith.constant 0 : index
    %7 = vector.load %arg4[%c0_5, %c0_6] : memref<128x128xf32, #tpu.memory_space<vmem>>, vector<128x128xf32>
    %cst_7 = arith.constant dense<0.000000e+00> : vector<8x128xf32>
    %8 = tpu.matmul %6, %7, %cst_7 {dimension_numbers = #tpu.dot_dimension_numbers<[1], [0], [0], [1], [0, 0, 1, 1], [], []>} : vector<8x128xf32>, vector<128x128xf32>, vector<8x128xf32> -> vector<8x128xf32>
    %c0_8 = arith.constant 0 : index
    %c0_9 = arith.constant 0 : index
    %9 = vector.load %arg5[%c0_8, %c0_9] : memref<1x128xf32, #tpu.memory_space<vmem>>, vector<1x128xf32>
    %10 = vector.broadcast %9 : vector<1x128xf32> to vector<8x128xf32>
    %11 = arith.addf %8, %10 : vector<8x128xf32>
    %12 = math.tanh %11 : vector<8x128xf32>
    %c0_10 = arith.constant 0 : index
    %c0_11 = arith.constant 0 : index
    %13 = vector.load %arg6[%c0_10, %c0_11] : memref<128x128xf32, #tpu.memory_space<vmem>>, vector<128x128xf32>
    %cst_12 = arith.constant dense<0.000000e+00> : vector<8x128xf32>
    %14 = tpu.matmul %12, %13, %cst_12 {dimension_numbers = #tpu.dot_dimension_numbers<[1], [0], [0], [1], [0, 0, 1, 1], [], []>} : vector<8x128xf32>, vector<128x128xf32>, vector<8x128xf32> -> vector<8x128xf32>
    %c0_13 = arith.constant 0 : index
    %c0_14 = arith.constant 0 : index
    %15 = vector.load %arg7[%c0_13, %c0_14] : memref<1x128xf32, #tpu.memory_space<vmem>>, vector<1x128xf32>
    %16 = vector.broadcast %15 : vector<1x128xf32> to vector<8x128xf32>
    %17 = arith.addf %14, %16 : vector<8x128xf32>
    %18 = math.tanh %17 : vector<8x128xf32>
    %c0_15 = arith.constant 0 : index
    %c0_16 = arith.constant 0 : index
    %19 = vector.load %arg8[%c0_15, %c0_16] : memref<128x128xf32, #tpu.memory_space<vmem>>, vector<128x128xf32>
    %cst_17 = arith.constant dense<0.000000e+00> : vector<8x128xf32>
    %20 = tpu.matmul %18, %19, %cst_17 {dimension_numbers = #tpu.dot_dimension_numbers<[1], [0], [0], [1], [0, 0, 1, 1], [], []>} : vector<8x128xf32>, vector<128x128xf32>, vector<8x128xf32> -> vector<8x128xf32>
    %c0_18 = arith.constant 0 : index
    %c0_19 = arith.constant 0 : index
    %21 = vector.load %arg9[%c0_18, %c0_19] : memref<1x128xf32, #tpu.memory_space<vmem>>, vector<1x128xf32>
    %22 = vector.broadcast %21 : vector<1x128xf32> to vector<8x128xf32>
    %23 = arith.addf %20, %22 : vector<8x128xf32>
    %24 = math.tanh %23 : vector<8x128xf32>
    %c0_20 = arith.constant 0 : index
    %c0_21 = arith.constant 0 : index
    %25 = vector.load %arg10[%c0_20, %c0_21] : memref<128x128xf32, #tpu.memory_space<vmem>>, vector<128x128xf32>
    %cst_22 = arith.constant dense<0.000000e+00> : vector<8x128xf32>
    %26 = tpu.matmul %24, %25, %cst_22 {dimension_numbers = #tpu.dot_dimension_numbers<[1], [0], [0], [1], [0, 0, 1, 1], [], []>} : vector<8x128xf32>, vector<128x128xf32>, vector<8x128xf32> -> vector<8x128xf32>
    %c0_23 = arith.constant 0 : index
    %c0_24 = arith.constant 0 : index
    %27 = vector.load %arg11[%c0_23, %c0_24] : memref<1x128xf32, #tpu.memory_space<vmem>>, vector<1x128xf32>
    %28 = vector.broadcast %27 : vector<1x128xf32> to vector<8x128xf32>
    %29 = arith.addf %26, %28 : vector<8x128xf32>
    %cst_25 = arith.constant dense<0xFF800000> : vector<8xf32>
    %30 = vector.multi_reduction <maximumf>, %29, %cst_25 [1] : vector<8x128xf32> to vector<8xf32>
    %31 = vector.shape_cast %30 : vector<8xf32> to vector<8x1xf32>
    %32 = vector.broadcast %31 : vector<8x1xf32> to vector<8x128xf32>
    %33 = arith.subf %29, %32 : vector<8x128xf32>
    %34 = math.exp %33 : vector<8x128xf32>
    %cst_26 = arith.constant dense<0.000000e+00> : vector<8xf32>
    %35 = vector.multi_reduction <add>, %34, %cst_26 [1] : vector<8x128xf32> to vector<8xf32>
    %36 = vector.shape_cast %35 : vector<8xf32> to vector<8x1xf32>
    %37 = tpu.reciprocal %36 : vector<8x1xf32> -> vector<8x1xf32>
    %38 = vector.broadcast %37 : vector<8x1xf32> to vector<8x128xf32>
    %39 = arith.mulf %34, %38 : vector<8x128xf32>
    %c0_27 = arith.constant 0 : index
    %c0_28 = arith.constant 0 : index
    %40 = vector.load %arg12[%c0_27, %c0_28] : memref<8x128xf32, #tpu.memory_space<vmem>>, vector<8x128xf32>
    tpu.vector_store %arg12[%c0_27, %c0_28], %39 {strides = array<i32>} : memref<8x128xf32, #tpu.memory_space<vmem>>, vector<8x128xf32>,
    return
  }
  func.func @transform_0(%arg0: i32) -> (i32, i32) {
    %c0_i32 = arith.constant 0 : i32
    %c0_i32_0 = arith.constant 0 : i32
    return %arg0, %c0_i32 : i32, i32
  }
  func.func @transform_1(%arg0: i32) -> (i32, i32) {
    %c0_i32 = arith.constant 0 : i32
    %c0_i32_0 = arith.constant 0 : i32
    %c0_i32_1 = arith.constant 0 : i32
    return %c0_i32, %c0_i32_0 : i32, i32
  }
  func.func @transform_2(%arg0: i32) -> (i32, i32) {
    %c0_i32 = arith.constant 0 : i32
    %c0_i32_0 = arith.constant 0 : i32
    %c0_i32_1 = arith.constant 0 : i32
    return %c0_i32, %c0_i32_0 : i32, i32
  }
  func.func @transform_3(%arg0: i32) -> (i32, i32) {
    %c0_i32 = arith.constant 0 : i32
    %c0_i32_0 = arith.constant 0 : i32
    %c0_i32_1 = arith.constant 0 : i32
    return %c0_i32, %c0_i32_0 : i32, i32
  }
  func.func @transform_4(%arg0: i32) -> (i32, i32) {
    %c0_i32 = arith.constant 0 : i32
    %c0_i32_0 = arith.constant 0 : i32
    %c0_i32_1 = arith.constant 0 : i32
    return %c0_i32, %c0_i32_0 : i32, i32
  }
  func.func @transform_5(%arg0: i32) -> (i32, i32) {
    %c0_i32 = arith.constant 0 : i32
    %c0_i32_0 = arith.constant 0 : i32
    %c0_i32_1 = arith.constant 0 : i32
    return %c0_i32, %c0_i32_0 : i32, i32
  }
  func.func @transform_6(%arg0: i32) -> (i32, i32) {
    %c0_i32 = arith.constant 0 : i32
    %c0_i32_0 = arith.constant 0 : i32
    %c0_i32_1 = arith.constant 0 : i32
    return %c0_i32, %c0_i32_0 : i32, i32
  }
  func.func @transform_7(%arg0: i32) -> (i32, i32) {
    %c0_i32 = arith.constant 0 : i32
    %c0_i32_0 = arith.constant 0 : i32
    %c0_i32_1 = arith.constant 0 : i32
    return %c0_i32, %c0_i32_0 : i32, i32
  }
  func.func @transform_8(%arg0: i32) -> (i32, i32) {
    %c0_i32 = arith.constant 0 : i32
    %c0_i32_0 = arith.constant 0 : i32
    %c0_i32_1 = arith.constant 0 : i32
    return %c0_i32, %c0_i32_0 : i32, i32
  }
  func.func @transform_9(%arg0: i32) -> (i32, i32) {
    %c0_i32 = arith.constant 0 : i32
    %c0_i32_0 = arith.constant 0 : i32
    %c0_i32_1 = arith.constant 0 : i32
    return %c0_i32, %c0_i32_0 : i32, i32
  }
  func.func @transform_10(%arg0: i32) -> (i32, i32) {
    %c0_i32 = arith.constant 0 : i32
    %c0_i32_0 = arith.constant 0 : i32
    %c0_i32_1 = arith.constant 0 : i32
    return %c0_i32, %c0_i32_0 : i32, i32
  }
  func.func @transform_11(%arg0: i32) -> (i32, i32) {
    %c0_i32 = arith.constant 0 : i32
    %c0_i32_0 = arith.constant 0 : i32
    return %arg0, %c0_i32 : i32, i32
  }
}

module attributes {stable_mosaic.version = 11 : i64} {
  func.func @mlp_kernel(%arg0: i32, %arg1: memref<8x20xf32, #tpu.memory_space<vmem>>, %arg2: memref<20x128xf32, #tpu.memory_space<vmem>>, %arg3: memref<1x128xf32, #tpu.memory_space<vmem>>, %arg4: memref<128x128xf32, #tpu.memory_space<vmem>>, %arg5: memref<1x128xf32, #tpu.memory_space<vmem>>, %arg6: memref<128x128xf32, #tpu.memory_space<vmem>>, %arg7: memref<1x128xf32, #tpu.memory_space<vmem>>, %arg8: memref<128x128xf32, #tpu.memory_space<vmem>>, %arg9: memref<1x128xf32, #tpu.memory_space<vmem>>, %arg10: memref<128x128xf32, #tpu.memory_space<vmem>>, %arg11: memref<1x128xf32, #tpu.memory_space<vmem>>, %arg12: memref<8x128xf32, #tpu.memory_space<vmem>>) attributes {dimension_semantics = [#tpu.dimension_semantics<parallel>], iteration_bounds = array<i64: 1>, scalar_prefetch = 0 : i64, scratch_operands = 0 : i64, tpu.core_type = #tpu.core_type<tc>, window_params = [{transform_indices = @transform_0, window_bounds = array<i64: 8, 20>}, {pipeline_mode = #tpu.pipeline_mode<synchronous>, transform_indices = @transform_1, window_bounds = array<i64: 20, 128>}, {pipeline_mode = #tpu.pipeline_mode<synchronous>, transform_indices = @transform_2, window_bounds = array<i64: 1, 128>}, {pipeline_mode = #tpu.pipeline_mode<synchronous>, transform_indices = @transform_3, window_bounds = array<i64: 128, 128>}, {pipeline_mode = #tpu.pipeline_mode<synchronous>, transform_indices = @transform_4, window_bounds = array<i64: 1, 128>}, {pipeline_mode = #tpu.pipeline_mode<synchronous>, transform_indices = @transform_5, window_bounds = array<i64: 128, 128>}, {pipeline_mode = #tpu.pipeline_mode<synchronous>, transform_indices = @transform_6, window_bounds = array<i64: 1, 128>}, {pipeline_mode = #tpu.pipeline_mode<synchronous>, transform_indices = @transform_7, window_bounds = array<i64: 128, 128>}, {pipeline_mode = #tpu.pipeline_mode<synchronous>, transform_indices = @transform_8, window_bounds = array<i64: 1, 128>}, {pipeline_mode = #tpu.pipeline_mode<synchronous>, transform_indices = @transform_9, window_bounds = array<i64: 128, 128>}, {pipeline_mode = #tpu.pipeline_mode<synchronous>, transform_indices = @transform_10, window_bounds = array<i64: 1, 128>}, {transform_indices = @transform_11, window_bounds = array<i64: 8, 128>}]} {
    %c0 = arith.constant 0 : index
    %c0_0 = arith.constant 0 : index
    %0 = vector.load %arg1[%c0, %c0_0] : memref<8x20xf32, #tpu.memory_space<vmem>>, vector<8x20xf32>
    %c0_1 = arith.constant 0 : index
    %c0_2 = arith.constant 0 : index
    %1 = vector.load %arg2[%c0_1, %c0_2] : memref<20x128xf32, #tpu.memory_space<vmem>>, vector<20x128xf32>
    %cst = arith.constant dense<0.000000e+00> : vector<8x128xf32>
    %2 = tpu.matmul %0, %1, %cst {dimension_numbers = #tpu.dot_dimension_numbers<[1], [0], [0], [1], [0, 0, 1, 1], [], []>} : vector<8x20xf32>, vector<20x128xf32>, vector<8x128xf32> -> vector<8x128xf32>
    %c0_3 = arith.constant 0 : index
    %c0_4 = arith.constant 0 : index
    %3 = vector.load %arg3[%c0_3, %c0_4] : memref<1x128xf32, #tpu.memory_space<vmem>>, vector<1x128xf32>
    %4 = vector.broadcast %3 : vector<1x128xf32> to vector<8x128xf32>
    %5 = arith.addf %2, %4 : vector<8x128xf32>
    %6 = math.tanh %5 : vector<8x128xf32>
    %c0_5 = arith.constant 0 : index
    %c0_6 = arith.constant 0 : index
    %7 = vector.load %arg4[%c0_5, %c0_6] : memref<128x128xf32, #tpu.memory_space<vmem>>, vector<128x128xf32>
    %cst_7 = arith.constant dense<0.000000e+00> : vector<8x128xf32>
    %8 = tpu.matmul %6, %7, %cst_7 {dimension_numbers = #tpu.dot_dimension_numbers<[1], [0], [0], [1], [0, 0, 1, 1], [], []>} : vector<8x128xf32>, vector<128x128xf32>, vector<8x128xf32> -> vector<8x128xf32>
    %c0_8 = arith.constant 0 : index
    %c0_9 = arith.constant 0 : index
    %9 = vector.load %arg5[%c0_8, %c0_9] : memref<1x128xf32, #tpu.memory_space<vmem>>, vector<1x128xf32>
    %10 = vector.broadcast %9 : vector<1x128xf32> to vector<8x128xf32>
    %11 = arith.addf %8, %10 : vector<8x128xf32>
    %12 = math.tanh %11 : vector<8x128xf32>
    %c0_10 = arith.constant 0 : index
    %c0_11 = arith.constant 0 : index
    %13 = vector.load %arg6[%c0_10, %c0_11] : memref<128x128xf32, #tpu.memory_space<vmem>>, vector<128x128xf32>
    %cst_12 = arith.constant dense<0.000000e+00> : vector<8x128xf32>
    %14 = tpu.matmul %12, %13, %cst_12 {dimension_numbers = #tpu.dot_dimension_numbers<[1], [0], [0], [1], [0, 0, 1, 1], [], []>} : vector<8x128xf32>, vector<128x128xf32>, vector<8x128xf32> -> vector<8x128xf32>
    %c0_13 = arith.constant 0 : index
    %c0_14 = arith.constant 0 : index
    %15 = vector.load %arg7[%c0_13, %c0_14] : memref<1x128xf32, #tpu.memory_space<vmem>>, vector<1x128xf32>
    %16 = vector.broadcast %15 : vector<1x128xf32> to vector<8x128xf32>
    %17 = arith.addf %14, %16 : vector<8x128xf32>
    %18 = math.tanh %17 : vector<8x128xf32>
    %c0_15 = arith.constant 0 : index
    %c0_16 = arith.constant 0 : index
    %19 = vector.load %arg8[%c0_15, %c0_16] : memref<128x128xf32, #tpu.memory_space<vmem>>, vector<128x128xf32>
    %cst_17 = arith.constant dense<0.000000e+00> : vector<8x128xf32>
    %20 = tpu.matmul %18, %19, %cst_17 {dimension_numbers = #tpu.dot_dimension_numbers<[1], [0], [0], [1], [0, 0, 1, 1], [], []>} : vector<8x128xf32>, vector<128x128xf32>, vector<8x128xf32> -> vector<8x128xf32>
    %c0_18 = arith.constant 0 : index
    %c0_19 = arith.constant 0 : index
    %21 = vector.load %arg9[%c0_18, %c0_19] : memref<1x128xf32, #tpu.memory_space<vmem>>, vector<1x128xf32>
    %22 = vector.broadcast %21 : vector<1x128xf32> to vector<8x128xf32>
    %23 = arith.addf %20, %22 : vector<8x128xf32>
    %24 = math.tanh %23 : vector<8x128xf32>
    %c0_20 = arith.constant 0 : index
    %c0_21 = arith.constant 0 : index
    %25 = vector.load %arg10[%c0_20, %c0_21] : memref<128x128xf32, #tpu.memory_space<vmem>>, vector<128x128xf32>
    %cst_22 = arith.constant dense<0.000000e+00> : vector<8x128xf32>
    %26 = tpu.matmul %24, %25, %cst_22 {dimension_numbers = #tpu.dot_dimension_numbers<[1], [0], [0], [1], [0, 0, 1, 1], [], []>} : vector<8x128xf32>, vector<128x128xf32>, vector<8x128xf32> -> vector<8x128xf32>
    %c0_23 = arith.constant 0 : index
    %c0_24 = arith.constant 0 : index
    %27 = vector.load %arg11[%c0_23, %c0_24] : memref<1x128xf32, #tpu.memory_space<vmem>>, vector<1x128xf32>
    %28 = vector.broadcast %27 : vector<1x128xf32> to vector<8x128xf32>
    %29 = arith.addf %26, %28 : vector<8x128xf32>
    %cst_25 = arith.constant dense<0xFF800000> : vector<8xf32>
    %30 = vector.multi_reduction <maximumf>, %29, %cst_25 [1] : vector<8x128xf32> to vector<8xf32>
    %31 = vector.shape_cast %30 : vector<8xf32> to vector<8x1xf32>
    %32 = vector.broadcast %31 : vector<8x1xf32> to vector<8x128xf32>
    %33 = arith.subf %29, %32 : vector<8x128xf32>
    %34 = math.exp %33 : vector<8x128xf32>
    %cst_26 = arith.constant dense<0.000000e+00> : vector<8xf32>
    %35 = vector.multi_reduction <add>, %34, %cst_26 [1] : vector<8x128xf32> to vector<8xf32>
    %36 = vector.shape_cast %35 : vector<8xf32> to vector<8x1xf32>
    %37 = tpu.reciprocal %36 : vector<8x1xf32> -> vector<8x1xf32>
    %38 = vector.broadcast %37 : vector<8x1xf32> to vector<8x128xf32>
    %39 = arith.mulf %34, %38 : vector<8x128xf32>
    %c0_27 = arith.constant 0 : index
    %c0_28 = arith.constant 0 : index
    %40 = vector.load %arg12[%c0_27, %c0_28] : memref<8x128xf32, #tpu.memory_space<vmem>>, vector<8x128xf32>
    tpu.vector_store %arg12[%c0_27, %c0_28], %39 {strides = array<i32>} : memref<8x128xf32, #tpu.memory_space<vmem>>, vector<8x128xf32>,
    return
  }
  func.func @transform_0(%arg0: i32) -> (i32, i32) {
    %c0_i32 = arith.constant 0 : i32
    %c0_i32_0 = arith.constant 0 : i32
    return %arg0, %c0_i32 : i32, i32
  }
  func.func @transform_1(%arg0: i32) -> (i32, i32) {
    %c0_i32 = arith.constant 0 : i32
    %c0_i32_0 = arith.constant 0 : i32
    %c0_i32_1 = arith.constant 0 : i32
    return %c0_i32, %c0_i32_0 : i32, i32
  }
  func.func @transform_2(%arg0: i32) -> (i32, i32) {
    %c0_i32 = arith.constant 0 : i32
    %c0_i32_0 = arith.constant 0 : i32
    %c0_i32_1 = arith.constant 0 : i32
    return %c0_i32, %c0_i32_0 : i32, i32
  }
  func.func @transform_3(%arg0: i32) -> (i32, i32) {
    %c0_i32 = arith.constant 0 : i32
    %c0_i32_0 = arith.constant 0 : i32
    %c0_i32_1 = arith.constant 0 : i32
    return %c0_i32, %c0_i32_0 : i32, i32
  }
  func.func @transform_4(%arg0: i32) -> (i32, i32) {
    %c0_i32 = arith.constant 0 : i32
    %c0_i32_0 = arith.constant 0 : i32
    %c0_i32_1 = arith.constant 0 : i32
    return %c0_i32, %c0_i32_0 : i32, i32
  }
  func.func @transform_5(%arg0: i32) -> (i32, i32) {
    %c0_i32 = arith.constant 0 : i32
    %c0_i32_0 = arith.constant 0 : i32
    %c0_i32_1 = arith.constant 0 : i32
    return %c0_i32, %c0_i32_0 : i32, i32
  }
  func.func @transform_6(%arg0: i32) -> (i32, i32) {
    %c0_i32 = arith.constant 0 : i32
    %c0_i32_0 = arith.constant 0 : i32
    %c0_i32_1 = arith.constant 0 : i32
    return %c0_i32, %c0_i32_0 : i32, i32
  }
  func.func @transform_7(%arg0: i32) -> (i32, i32) {
    %c0_i32 = arith.constant 0 : i32
    %c0_i32_0 = arith.constant 0 : i32
    %c0_i32_1 = arith.constant 0 : i32
    return %c0_i32, %c0_i32_0 : i32, i32
  }
  func.func @transform_8(%arg0: i32) -> (i32, i32) {
    %c0_i32 = arith.constant 0 : i32
    %c0_i32_0 = arith.constant 0 : i32
    %c0_i32_1 = arith.constant 0 : i32
    return %c0_i32, %c0_i32_0 : i32, i32
  }
  func.func @transform_9(%arg0: i32) -> (i32, i32) {
    %c0_i32 = arith.constant 0 : i32
    %c0_i32_0 = arith.constant 0 : i32
    %c0_i32_1 = arith.constant 0 : i32
    return %c0_i32, %c0_i32_0 : i32, i32
  }
  func.func @transform_10(%arg0: i32) -> (i32, i32) {
    %c0_i32 = arith.constant 0 : i32
    %c0_i32_0 = arith.constant 0 : i32
    %c0_i32_1 = arith.constant 0 : i32
    return %c0_i32, %c0_i32_0 : i32, i32
  }
  func.func @transform_11(%arg0: i32) -> (i32, i32) {
    %c0_i32 = arith.constant 0 : i32
    %c0_i32_0 = arith.constant 0 : i32
    return %arg0, %c0_i32 : i32, i32
  }
}

</mosaic_0001>

<llo_original>
// kernel: tpu_custom_call.1
$region0: #{tpu_custom_call.1}
  #allocation0 [shape = 'u32[]', space=smem, size = 0x4, offset = 0x4, fixed_abs, tag = 'smem constant byte address 0x4 - core index']
  #allocation1 [shape = 'u32[144,128]{1,0:T(1,128)}', space=vmem, size = 0x12000, scoped, tag = 'internal scratch']
  %s0 = inlined_call_operand.hbm [shape: f32[8,20], index: 0, kind: input, shape index: {}]
  %s1 = inlined_call_operand.hbm [shape: f32[20,128], index: 1, kind: input, shape index: {}]
  %s2 = inlined_call_operand.vmem [shape: f32[1,128], index: 2, kind: input, shape index: {}]
  %s3 = inlined_call_operand.hbm [shape: f32[128,128], index: 3, kind: input, shape index: {}]
  %s4 = inlined_call_operand.vmem [shape: f32[1,128], index: 4, kind: input, shape index: {}]
  %s5 = inlined_call_operand.hbm [shape: f32[128,128], index: 5, kind: input, shape index: {}]
  %s6 = inlined_call_operand.vmem [shape: f32[1,128], index: 6, kind: input, shape index: {}]
  %s7 = inlined_call_operand.hbm [shape: f32[128,128], index: 7, kind: input, shape index: {}]
  %s8 = inlined_call_operand.vmem [shape: f32[1,128], index: 8, kind: input, shape index: {}]
  %s9 = inlined_call_operand.hbm [shape: f32[128,128], index: 9, kind: input, shape index: {}]
  %s10 = inlined_call_operand.vmem [shape: f32[1,128], index: 10, kind: input, shape index: {}]
  %s11 = inlined_call_operand.hbm [shape: f32[8,128], index: 11, kind: output, shape index: {}]
  %s12 = sld [smem:[#allocation0]]
  $region78: #{tpu_custom_call.1} parent=0
    _
  %s14 = ssub.s32 1, %s12
  %s15 = scalar_select 0, %s14, %s12
  $region1: #{tpu_custom_call.1} parent=0
    #allocation2 [shape = 'u8[4096]{0}', space=vmem, size = 0x1000, scoped, tag = 'input window, operand 0, single buffered']
    #allocation3 [shape = 's32[1]{0}', space=sflag, size = 0x4, scoped, tag = 'scoped memory for tpu_custom_call.1']
    #allocation4 [shape = 's32[1]{0}', space=sflag, size = 0x4, scoped, tag = 'scoped memory for tpu_custom_call.1']
    #allocation5 [shape = 'u8[12288]{0}', space=vmem, size = 0x3000, scoped, tag = 'input window, operand 1, single buffered']
    #allocation6 [shape = 's32[1]{0}', space=sflag, size = 0x4, scoped, tag = 'scoped memory for tpu_custom_call.1']
    #allocation7 [shape = 'u8[65536]{0}', space=vmem, size = 0x10000, scoped, tag = 'input window, operand 3, single buffered']
    #allocation8 [shape = 'u8[65536]{0}', space=vmem, size = 0x10000, scoped, tag = 'input window, operand 5, single buffered']
    #allocation9 [shape = 's32[1]{0}', space=sflag, size = 0x4, scoped, tag = 'scoped memory for tpu_custom_call.1']
    #allocation10 [shape = 'u8[65536]{0}', space=vmem, size = 0x10000, scoped, tag = 'input window, operand 7, single buffered']
    #allocation11 [shape = 'u8[65536]{0}', space=vmem, size = 0x10000, scoped, tag = 'input window, operand 9, single buffered']
    #allocation12 [shape = 's32[1]{0}', space=sflag, size = 0x4, scoped, tag = 'scoped memory for tpu_custom_call.1']
    #allocation13 [shape = 'u8[4096]{0}', space=vmem, size = 0x1000, scoped, tag = 'output window, operand 0, single buffered']
    %16 = vsyncpa [#allocation3], 0
    %17 = vsyncpa [#allocation6], 0
    %18 = vsyncpa [#allocation9], 0
    %19 = vsyncpa [#allocation12], 0
    %20 = vsyncpa [#allocation4], 0
    // Predicated region
    $region2: #{tpu_custom_call.1} parent=1 // pred_check
      _
    $region3: #{tpu_custom_call.1} parent=1 // pred_check_branch
      %22 = sbr.rel (0) target = $region5
    $region4: #{tpu_custom_call.1} parent=1 // pred_region
      %s24 = ssub.s32 128, 128
      %25 = vsyncadd [#allocation3], %s24
      %s27 = sshll.u32 [#allocation2], 4
      %s28 = int_to_ptr.vmem [resolvable:$true] %s27
      %30 = dma.hbm_to_vmem [thread:$0]  %s0, 128, %s28, [#allocation3]
    $region5: #{tpu_custom_call.1} parent=1 // pred_fallthru
      _
    // Predicated region
    $region6: #{tpu_custom_call.1} parent=1 // pred_check
      _
    $region7: #{tpu_custom_call.1} parent=1 // pred_check_branch
      %32 = sbr.rel (0) target = $region9
    $region8: #{tpu_custom_call.1} parent=1 // pred_region
      %s34 = ssub.s32 384, 384
      %35 = vsyncadd [#allocation6], %s34
      %s36 = sshll.u32 [#allocation5], 4
      %s37 = int_to_ptr.vmem [resolvable:$true] %s36
      %42 = dma.hbm_to_vmem [thread:$0]  %s1, 384, %s37, [#allocation6], 128, 128, 8
    $region9: #{tpu_custom_call.1} parent=1 // pred_fallthru
      _
    // Predicated region
    $region10: #{tpu_custom_call.1} parent=1 // pred_check
      _
    $region11: #{tpu_custom_call.1} parent=1 // pred_check_branch
      %44 = sbr.rel (0) target = $region13
    $region12: #{tpu_custom_call.1} parent=1 // pred_region
      _
    $region13: #{tpu_custom_call.1} parent=1 // pred_fallthru
      _
    // Predicated region
    $region14: #{tpu_custom_call.1} parent=1 // pred_check
      _
    $region15: #{tpu_custom_call.1} parent=1 // pred_check_branch
      %46 = sbr.rel (0) target = $region17
    $region16: #{tpu_custom_call.1} parent=1 // pred_region
      %s48 = ssub.s32 2048, 2048
      %49 = vsyncadd [#allocation6], %s48
      %s50 = sshll.u32 [#allocation7], 4
      %s51 = int_to_ptr.vmem [resolvable:$true] %s50
      %56 = dma.hbm_to_vmem [thread:$0]  %s3, 2048, %s51, [#allocation6], 128, 128, 8
    $region17: #{tpu_custom_call.1} parent=1 // pred_fallthru
      _
    // Predicated region
    $region18: #{tpu_custom_call.1} parent=1 // pred_check
      _
    $region19: #{tpu_custom_call.1} parent=1 // pred_check_branch
      %58 = sbr.rel (0) target = $region21
    $region20: #{tpu_custom_call.1} parent=1 // pred_region
      _
    $region21: #{tpu_custom_call.1} parent=1 // pred_fallthru
      _
    // Predicated region
    $region22: #{tpu_custom_call.1} parent=1 // pred_check
      _
    $region23: #{tpu_custom_call.1} parent=1 // pred_check_branch
      %60 = sbr.rel (0) target = $region25
    $region24: #{tpu_custom_call.1} parent=1 // pred_region
      %s62 = ssub.s32 2048, 2048
      %63 = vsyncadd [#allocation9], %s62
      %s64 = sshll.u32 [#allocation8], 4
      %s65 = int_to_ptr.vmem [resolvable:$true] %s64
      %70 = dma.hbm_to_vmem [thread:$0]  %s5, 2048, %s65, [#allocation9], 128, 128, 8
    $region25: #{tpu_custom_call.1} parent=1 // pred_fallthru
      _
    // Predicated region
    $region26: #{tpu_custom_call.1} parent=1 // pred_check
      _
    $region27: #{tpu_custom_call.1} parent=1 // pred_check_branch
      %72 = sbr.rel (0) target = $region29
    $region28: #{tpu_custom_call.1} parent=1 // pred_region
      _
    $region29: #{tpu_custom_call.1} parent=1 // pred_fallthru
      _
    // Predicated region
    $region30: #{tpu_custom_call.1} parent=1 // pred_check
      _
    $region31: #{tpu_custom_call.1} parent=1 // pred_check_branch
      %74 = sbr.rel (0) target = $region33
    $region32: #{tpu_custom_call.1} parent=1 // pred_region
      %s76 = ssub.s32 2048, 2048
      %77 = vsyncadd [#allocation9], %s76
      %s78 = sshll.u32 [#allocation10], 4
      %s79 = int_to_ptr.vmem [resolvable:$true] %s78
      %84 = dma.hbm_to_vmem [thread:$0]  %s7, 2048, %s79, [#allocation9], 128, 128, 8
    $region33: #{tpu_custom_call.1} parent=1 // pred_fallthru
      _
    // Predicated region
    $region34: #{tpu_custom_call.1} parent=1 // pred_check
      _
    $region35: #{tpu_custom_call.1} parent=1 // pred_check_branch
      %86 = sbr.rel (0) target = $region37
    $region36: #{tpu_custom_call.1} parent=1 // pred_region
      _
    $region37: #{tpu_custom_call.1} parent=1 // pred_fallthru
      _
    // Predicated region
    $region38: #{tpu_custom_call.1} parent=1 // pred_check
      _
    $region39: #{tpu_custom_call.1} parent=1 // pred_check_branch
      %88 = sbr.rel (0) target = $region41
    $region40: #{tpu_custom_call.1} parent=1 // pred_region
      %s90 = ssub.s32 2048, 2048
      %91 = vsyncadd [#allocation12], %s90
      %s92 = sshll.u32 [#allocation11], 4
      %s93 = int_to_ptr.vmem [resolvable:$true] %s92
      %98 = dma.hbm_to_vmem [thread:$0]  %s9, 2048, %s93, [#allocation12], 128, 128, 8
    $region41: #{tpu_custom_call.1} parent=1 // pred_fallthru
      _
    // Predicated region
    $region42: #{tpu_custom_call.1} parent=1 // pred_check
      _
    $region43: #{tpu_custom_call.1} parent=1 // pred_check_branch
      %100 = sbr.rel (0) target = $region45
    $region44: #{tpu_custom_call.1} parent=1 // pred_region
      _
    $region45: #{tpu_custom_call.1} parent=1 // pred_fallthru
      _
    // Predicated region
    $region46: #{tpu_custom_call.1} parent=1 // pred_check
      _
    $region47: #{tpu_custom_call.1} parent=1 // pred_check_branch
      %102 = sbr.rel (0) target = $region49
    $region48: #{tpu_custom_call.1} parent=1 // pred_region
      %103 = dma.done [#allocation3], 128
    $region49: #{tpu_custom_call.1} parent=1 // pred_fallthru
      _
    // Predicated region
    $region50: #{tpu_custom_call.1} parent=1 // pred_check
      _
    $region51: #{tpu_custom_call.1} parent=1 // pred_check_branch
      %105 = sbr.rel (0) target = $region53
    $region52: #{tpu_custom_call.1} parent=1 // pred_region
      %106 = dma.done [#allocation6], 384
    $region53: #{tpu_custom_call.1} parent=1 // pred_fallthru
      _
    // Predicated region
    $region54: #{tpu_custom_call.1} parent=1 // pred_check
      _
    $region55: #{tpu_custom_call.1} parent=1 // pred_check_branch
      %108 = sbr.rel (0) target = $region57
    $region56: #{tpu_custom_call.1} parent=1 // pred_region
      %109 = dma.done [#allocation6], 2048
    $region57: #{tpu_custom_call.1} parent=1 // pred_fallthru
      _
    // Predicated region
    $region58: #{tpu_custom_call.1} parent=1 // pred_check
      _
    $region59: #{tpu_custom_call.1} parent=1 // pred_check_branch
      %111 = sbr.rel (0) target = $region61
    $region60: #{tpu_custom_call.1} parent=1 // pred_region
      %112 = dma.done [#allocation9], 2048
    $region61: #{tpu_custom_call.1} parent=1 // pred_fallthru
      _
    // Predicated region
    $region62: #{tpu_custom_call.1} parent=1 // pred_check
      _
    $region63: #{tpu_custom_call.1} parent=1 // pred_check_branch
      %114 = sbr.rel (0) target = $region65
    $region64: #{tpu_custom_call.1} parent=1 // pred_region
      %115 = dma.done [#allocation9], 2048
    $region65: #{tpu_custom_call.1} parent=1 // pred_fallthru
      _
    // Predicated region
    $region66: #{tpu_custom_call.1} parent=1 // pred_check
      _
    $region67: #{tpu_custom_call.1} parent=1 // pred_check_branch
      %117 = sbr.rel (0) target = $region69
    $region68: #{tpu_custom_call.1} parent=1 // pred_region
      %118 = dma.done [#allocation12], 2048
    $region69: #{tpu_custom_call.1} parent=1 // pred_fallthru
      _
    %v119 = vld [vmem:[#allocation2] sm:$0xff]
    %v120 = vld [vmem:[#allocation5] sm:$0xff]
    %v121 = vld [vmem:[#allocation5 + $0x8] sm:$0xff]
    %v122 = vld [vmem:[#allocation5 + $0x10] sm:$0xf]
    %v123 = vld [vmem:[%s2] sm:$0x1]
    %v125 = vlaneseq
    %v126 = vshrl.u32 %v125, 7
    %v127 = vsub.s32 0, %v126
    %v128 = vrot.slane %v123, %v127
    %vm130 = vcmask 162816
    %v132 = vsel %vm130, %v119, 0
    %vm134 = vcmask 1043456
    %v136 = vsel %vm134, %v122, 0
    %138 = vmatprep.subr.mxu0 0.0
    %139 = vmatpush1.msra.mxu0 %v120
    %140 = vmatprep.subr.mxu0 0.0
    %141 = vmatpush1.msra.mxu0 %v121
    %142 = vmatprep.subr.mxu0 0.0
    %143 = vmatpush1.msra.mxu0 %v136
    %144 = vmatprep.subr.mxu0 0.0
    %145 = vmatpush1.msra.mxu0 0.0
    %146 = vmatprep.subr.mxu0 0.0
    %147 = vmatpush1.msra.mxu0 0.0
    %148 = vmatprep.subr.mxu0 0.0
    %149 = vmatpush1.msra.mxu0 0.0
    %150 = vmatprep.subr.mxu0 0.0
    %151 = vmatpush1.msra.mxu0 0.0
    %152 = vmatprep.subr.mxu0 0.0
    %153 = vmatpush1.msra.mxu0 0.0
    %154 = vmatprep.subr.mxu0 0.0
    %155 = vmatpush1.msra.mxu0 0.0
    %156 = vmatprep.subr.mxu0 0.0
    %157 = vmatpush1.msra.mxu0 0.0
    %158 = vmatprep.subr.mxu0 0.0
    %159 = vmatpush1.msra.mxu0 0.0
    %160 = vmatprep.subr.mxu0 0.0
    %161 = vmatpush1.msra.mxu0 0.0
    %162 = vmatprep.subr.mxu0 0.0
    %163 = vmatpush1.msra.mxu0 0.0
    %164 = vmatprep.subr.mxu0 0.0
    %165 = vmatpush1.msra.mxu0 0.0
    %166 = vmatprep.subr.mxu0 0.0
    %167 = vmatpush1.msra.mxu0 0.0
    %168 = vmatprep.subr.mxu0 0.0
    %169 = vmatpush1.msra.mxu0 0.0
    %170 = vmatprep.subr.mxu0 0.0
    %171 = vmatpush1.msra.mxu0 0.0
    %172 = vmatprep.subr.mxu0 0.0
    %173 = vmatpush1.msra.mxu0 0.0
    %174 = vmatprep.subr.mxu0 0.0
    %175 = vmatpush1.msra.mxu0 0.0
    %176 = vmatprep.subr.mxu0 0.0
    %177 = vmatpush1.msra.mxu0 0.0
    %178 = vmatprep.subr.mxu0 0.0
    %179 = vmatpush1.msra.mxu0 0.0
    %180 = vmatprep.subr.mxu0 0.0
    %181 = vmatpush1.msra.mxu0 0.0
    %182 = vmatprep.subr.mxu0 0.0
    %183 = vmatpush1.msra.mxu0 0.0
    %184 = vmatprep.subr.mxu0 0.0
    %185 = vmatpush1.msra.mxu0 0.0
    %186 = vmatprep.subr.mxu0 0.0
    %187 = vmatpush1.msra.mxu0 0.0
    %188 = vmatprep.subr.mxu0 0.0
    %189 = vmatpush1.msra.mxu0 0.0
    %190 = vmatprep.subr.mxu0 0.0
    %191 = vmatpush1.msra.mxu0 0.0
    %192 = vmatprep.subr.mxu0 0.0
    %193 = vmatpush1.msra.mxu0 0.0
    %194 = vmatprep.subr.mxu0 0.0
    %195 = vmatpush1.msra.mxu0 0.0
    %196 = vmatprep.subr.mxu0 0.0
    %197 = vmatpush1.msra.mxu0 0.0
    %198 = vmatprep.subr.mxu0 0.0
    %199 = vmatpush1.msra.mxu0 0.0
    %200 = vmatprep.subr.mxu0 0.0
    %201 = vmatpush1.msra.mxu0 0.0
    %202 = vmatprep.mubr.f32.mxu0 0.0
    %203 = vmatmul.mubr.f32.gmra.mrb[0].mxu0 %v132
    %v204 = vpop.f32.mrb[0].mxu0
    %v205 = vadd.f32 %v128, %v204
    %v206 = vpop.f32.mrb[0].mxu0
    %207 = vdwg.mxu0
    %v208 = vtanh.pop %v205
    %v209 = vld [vmem:[#allocation7] sm:$0xff]
    %v210 = vld [vmem:[#allocation7 + $0x8] sm:$0xff]
    %v211 = vld [vmem:[#allocation7 + $0x10] sm:$0xff]
    %v212 = vld [vmem:[#allocation7 + $0x18] sm:$0xff]
    %v213 = vld [vmem:[#allocation7 + $0x20] sm:$0xff]
    %v214 = vld [vmem:[#allocation7 + $0x28] sm:$0xff]
    %v215 = vld [vmem:[#allocation7 + $0x30] sm:$0xff]
    %v216 = vld [vmem:[#allocation7 + $0x38] sm:$0xff]
    %v217 = vld [vmem:[#allocation7 + $0x40] sm:$0xff]
    %v218 = vld [vmem:[#allocation7 + $0x48] sm:$0xff]
    %v219 = vld [vmem:[#allocation7 + $0x50] sm:$0xff]
    %v220 = vld [vmem:[#allocation7 + $0x58] sm:$0xff]
    %v221 = vld [vmem:[#allocation7 + $0x60] sm:$0xff]
    %v222 = vld [vmem:[#allocation7 + $0x68] sm:$0xff]
    %v223 = vld [vmem:[#allocation7 + $0x70] sm:$0xff]
    %v224 = vld [vmem:[#allocation7 + $0x78] sm:$0xff]
    %v225 = vld [vmem:[%s4] sm:$0x1]
    %v227 = vlaneseq
    %v228 = vshrl.u32 %v227, 7
    %v229 = vsub.s32 0, %v228
    %v230 = vrot.slane %v225, %v229
    %232 = vmatprep.subr.mxu0 0.0
    %233 = vmatpush1.msra.mxu0 %v209
    %234 = vmatprep.subr.mxu0 0.0
    %235 = vmatpush1.msra.mxu0 %v210
    %236 = vmatprep.subr.mxu0 0.0
    %237 = vmatpush1.msra.mxu0 %v211
    %238 = vmatprep.subr.mxu0 0.0
    %239 = vmatpush1.msra.mxu0 %v212
    %240 = vmatprep.subr.mxu0 0.0
    %241 = vmatpush1.msra.mxu0 %v213
    %242 = vmatprep.subr.mxu0 0.0
    %243 = vmatpush1.msra.mxu0 %v214
    %244 = vmatprep.subr.mxu0 0.0
    %245 = vmatpush1.msra.mxu0 %v215
    %246 = vmatprep.subr.mxu0 0.0
    %247 = vmatpush1.msra.mxu0 %v216
    %248 = vmatprep.subr.mxu0 0.0
    %249 = vmatpush1.msra.mxu0 %v217
    %250 = vmatprep.subr.mxu0 0.0
    %251 = vmatpush1.msra.mxu0 %v218
    %252 = vmatprep.subr.mxu0 0.0
    %253 = vmatpush1.msra.mxu0 %v219
    %254 = vmatprep.subr.mxu0 0.0
    %255 = vmatpush1.msra.mxu0 %v220
    %256 = vmatprep.subr.mxu0 0.0
    %257 = vmatpush1.msra.mxu0 %v221
    %258 = vmatprep.subr.mxu0 0.0
    %259 = vmatpush1.msra.mxu0 %v222
    %260 = vmatprep.subr.mxu0 0.0
    %261 = vmatpush1.msra.mxu0 %v223
    %262 = vmatprep.subr.mxu0 0.0
    %263 = vmatpush1.msra.mxu0 %v224
    %264 = vmatprep.subr.mxu0 0.0
    %265 = vmatpush1.msra.mxu0 0.0
    %266 = vmatprep.subr.mxu0 0.0
    %267 = vmatpush1.msra.mxu0 0.0
    %268 = vmatprep.subr.mxu0 0.0
    %269 = vmatpush1.msra.mxu0 0.0
    %270 = vmatprep.subr.mxu0 0.0
    %271 = vmatpush1.msra.mxu0 0.0
    %272 = vmatprep.subr.mxu0 0.0
    %273 = vmatpush1.msra.mxu0 0.0
    %274 = vmatprep.subr.mxu0 0.0
    %275 = vmatpush1.msra.mxu0 0.0
    %276 = vmatprep.subr.mxu0 0.0
    %277 = vmatpush1.msra.mxu0 0.0
    %278 = vmatprep.subr.mxu0 0.0
    %279 = vmatpush1.msra.mxu0 0.0
    %280 = vmatprep.subr.mxu0 0.0
    %281 = vmatpush1.msra.mxu0 0.0
    %282 = vmatprep.subr.mxu0 0.0
    %283 = vmatpush1.msra.mxu0 0.0
    %284 = vmatprep.subr.mxu0 0.0
    %285 = vmatpush1.msra.mxu0 0.0
    %286 = vmatprep.subr.mxu0 0.0
    %287 = vmatpush1.msra.mxu0 0.0
    %288 = vmatprep.subr.mxu0 0.0
    %289 = vmatpush1.msra.mxu0 0.0
    %290 = vmatprep.subr.mxu0 0.0
    %291 = vmatpush1.msra.mxu0 0.0
    %292 = vmatprep.subr.mxu0 0.0
    %293 = vmatpush1.msra.mxu0 0.0
    %294 = vmatprep.subr.mxu0 0.0
    %295 = vmatpush1.msra.mxu0 0.0
    %296 = vmatprep.mubr.f32.mxu0 0.0
    %297 = vmatmul.mubr.f32.gmra.mrb[0].mxu0 %v208
    %v298 = vpop.f32.mrb[0].mxu0
    %v299 = vadd.f32 %v230, %v298
    %v300 = vpop.f32.mrb[0].mxu0
    %301 = vdwg.mxu0
    %v302 = vtanh.pop %v299
    %v303 = vld [vmem:[#allocation8] sm:$0xff]
    %v304 = vld [vmem:[#allocation8 + $0x8] sm:$0xff]
    %v305 = vld [vmem:[#allocation8 + $0x10] sm:$0xff]
    %v306 = vld [vmem:[#allocation8 + $0x18] sm:$0xff]
    %v307 = vld [vmem:[#allocation8 + $0x20] sm:$0xff]
    %v308 = vld [vmem:[#allocation8 + $0x28] sm:$0xff]
    %v309 = vld [vmem:[#allocation8 + $0x30] sm:$0xff]
    %v310 = vld [vmem:[#allocation8 + $0x38] sm:$0xff]
    %v311 = vld [vmem:[#allocation8 + $0x40] sm:$0xff]
    %v312 = vld [vmem:[#allocation8 + $0x48] sm:$0xff]
    %v313 = vld [vmem:[#allocation8 + $0x50] sm:$0xff]
    %v314 = vld [vmem:[#allocation8 + $0x58] sm:$0xff]
    %v315 = vld [vmem:[#allocation8 + $0x60] sm:$0xff]
    %v316 = vld [vmem:[#allocation8 + $0x68] sm:$0xff]
    %v317 = vld [vmem:[#allocation8 + $0x70] sm:$0xff]
    %v318 = vld [vmem:[#allocation8 + $0x78] sm:$0xff]
    %v319 = vld [vmem:[%s6] sm:$0x1]
    %v321 = vlaneseq
    %v322 = vshrl.u32 %v321, 7
    %v323 = vsub.s32 0, %v322
    %v324 = vrot.slane %v319, %v323
    %326 = vmatprep.subr.mxu0 0.0
    %327 = vmatpush1.msra.mxu0 %v303
    %328 = vmatprep.subr.mxu0 0.0
    %329 = vmatpush1.msra.mxu0 %v304
    %330 = vmatprep.subr.mxu0 0.0
    %331 = vmatpush1.msra.mxu0 %v305
    %332 = vmatprep.subr.mxu0 0.0
    %333 = vmatpush1.msra.mxu0 %v306
    %334 = vmatprep.subr.mxu0 0.0
    %335 = vmatpush1.msra.mxu0 %v307
    %336 = vmatprep.subr.mxu0 0.0
    %337 = vmatpush1.msra.mxu0 %v308
    %338 = vmatprep.subr.mxu0 0.0
    %339 = vmatpush1.msra.mxu0 %v309
    %340 = vmatprep.subr.mxu0 0.0
    %341 = vmatpush1.msra.mxu0 %v310
    %342 = vmatprep.subr.mxu0 0.0
    %343 = vmatpush1.msra.mxu0 %v311
    %344 = vmatprep.subr.mxu0 0.0
    %345 = vmatpush1.msra.mxu0 %v312
    %346 = vmatprep.subr.mxu0 0.0
    %347 = vmatpush1.msra.mxu0 %v313
    %348 = vmatprep.subr.mxu0 0.0
    %349 = vmatpush1.msra.mxu0 %v314
    %350 = vmatprep.subr.mxu0 0.0
    %351 = vmatpush1.msra.mxu0 %v315
    %352 = vmatprep.subr.mxu0 0.0
    %353 = vmatpush1.msra.mxu0 %v316
    %354 = vmatprep.subr.mxu0 0.0
    %355 = vmatpush1.msra.mxu0 %v317
    %356 = vmatprep.subr.mxu0 0.0
    %357 = vmatpush1.msra.mxu0 %v318
    %358 = vmatprep.subr.mxu0 0.0
    %359 = vmatpush1.msra.mxu0 0.0
    %360 = vmatprep.subr.mxu0 0.0
    %361 = vmatpush1.msra.mxu0 0.0
    %362 = vmatprep.subr.mxu0 0.0
    %363 = vmatpush1.msra.mxu0 0.0
    %364 = vmatprep.subr.mxu0 0.0
    %365 = vmatpush1.msra.mxu0 0.0
    %366 = vmatprep.subr.mxu0 0.0
    %367 = vmatpush1.msra.mxu0 0.0
    %368 = vmatprep.subr.mxu0 0.0
    %369 = vmatpush1.msra.mxu0 0.0
    %370 = vmatprep.subr.mxu0 0.0
    %371 = vmatpush1.msra.mxu0 0.0
    %372 = vmatprep.subr.mxu0 0.0
    %373 = vmatpush1.msra.mxu0 0.0
    %374 = vmatprep.subr.mxu0 0.0
    %375 = vmatpush1.msra.mxu0 0.0
    %376 = vmatprep.subr.mxu0 0.0
    %377 = vmatpush1.msra.mxu0 0.0
    %378 = vmatprep.subr.mxu0 0.0
    %379 = vmatpush1.msra.mxu0 0.0
    %380 = vmatprep.subr.mxu0 0.0
    %381 = vmatpush1.msra.mxu0 0.0
    %382 = vmatprep.subr.mxu0 0.0
    %383 = vmatpush1.msra.mxu0 0.0
    %384 = vmatprep.subr.mxu0 0.0
    %385 = vmatpush1.msra.mxu0 0.0
    %386 = vmatprep.subr.mxu0 0.0
    %387 = vmatpush1.msra.mxu0 0.0
    %388 = vmatprep.subr.mxu0 0.0
    %389 = vmatpush1.msra.mxu0 0.0
    %390 = vmatprep.mubr.f32.mxu0 0.0
    %391 = vmatmul.mubr.f32.gmra.mrb[0].mxu0 %v302
    %v392 = vpop.f32.mrb[0].mxu0
    %v393 = vadd.f32 %v324, %v392
    %v394 = vpop.f32.mrb[0].mxu0
    %395 = vdwg.mxu0
    %v396 = vtanh.pop %v393
    %v397 = vld [vmem:[#allocation10] sm:$0xff]
    %v398 = vld [vmem:[#allocation10 + $0x8] sm:$0xff]
    %v399 = vld [vmem:[#allocation10 + $0x10] sm:$0xff]
    %v400 = vld [vmem:[#allocation10 + $0x18] sm:$0xff]
    %v401 = vld [vmem:[#allocation10 + $0x20] sm:$0xff]
    %v402 = vld [vmem:[#allocation10 + $0x28] sm:$0xff]
    %v403 = vld [vmem:[#allocation10 + $0x30] sm:$0xff]
    %v404 = vld [vmem:[#allocation10 + $0x38] sm:$0xff]
    %v405 = vld [vmem:[#allocation10 + $0x40] sm:$0xff]
    %v406 = vld [vmem:[#allocation10 + $0x48] sm:$0xff]
    %v407 = vld [vmem:[#allocation10 + $0x50] sm:$0xff]
    %v408 = vld [vmem:[#allocation10 + $0x58] sm:$0xff]
    %v409 = vld [vmem:[#allocation10 + $0x60] sm:$0xff]
    %v410 = vld [vmem:[#allocation10 + $0x68] sm:$0xff]
    %v411 = vld [vmem:[#allocation10 + $0x70] sm:$0xff]
    %v412 = vld [vmem:[#allocation10 + $0x78] sm:$0xff]
    %v413 = vld [vmem:[%s8] sm:$0x1]
    %v415 = vlaneseq
    %v416 = vshrl.u32 %v415, 7
    %v417 = vsub.s32 0, %v416
    %v418 = vrot.slane %v413, %v417
    %420 = vmatprep.subr.mxu0 0.0
    %421 = vmatpush1.msra.mxu0 %v397
    %422 = vmatprep.subr.mxu0 0.0
    %423 = vmatpush1.msra.mxu0 %v398
    %424 = vmatprep.subr.mxu0 0.0
    %425 = vmatpush1.msra.mxu0 %v399
    %426 = vmatprep.subr.mxu0 0.0
    %427 = vmatpush1.msra.mxu0 %v400
    %428 = vmatprep.subr.mxu0 0.0
    %429 = vmatpush1.msra.mxu0 %v401
    %430 = vmatprep.subr.mxu0 0.0
    %431 = vmatpush1.msra.mxu0 %v402
    %432 = vmatprep.subr.mxu0 0.0
    %433 = vmatpush1.msra.mxu0 %v403
    %434 = vmatprep.subr.mxu0 0.0
    %435 = vmatpush1.msra.mxu0 %v404
    %436 = vmatprep.subr.mxu0 0.0
    %437 = vmatpush1.msra.mxu0 %v405
    %438 = vmatprep.subr.mxu0 0.0
    %439 = vmatpush1.msra.mxu0 %v406
    %440 = vmatprep.subr.mxu0 0.0
    %441 = vmatpush1.msra.mxu0 %v407
    %442 = vmatprep.subr.mxu0 0.0
    %443 = vmatpush1.msra.mxu0 %v408
    %444 = vmatprep.subr.mxu0 0.0
    %445 = vmatpush1.msra.mxu0 %v409
    %446 = vmatprep.subr.mxu0 0.0
    %447 = vmatpush1.msra.mxu0 %v410
    %448 = vmatprep.subr.mxu0 0.0
    %449 = vmatpush1.msra.mxu0 %v411
    %450 = vmatprep.subr.mxu0 0.0
    %451 = vmatpush1.msra.mxu0 %v412
    %452 = vmatprep.subr.mxu0 0.0
    %453 = vmatpush1.msra.mxu0 0.0
    %454 = vmatprep.subr.mxu0 0.0
    %455 = vmatpush1.msra.mxu0 0.0
    %456 = vmatprep.subr.mxu0 0.0
    %457 = vmatpush1.msra.mxu0 0.0
    %458 = vmatprep.subr.mxu0 0.0
    %459 = vmatpush1.msra.mxu0 0.0
    %460 = vmatprep.subr.mxu0 0.0
    %461 = vmatpush1.msra.mxu0 0.0
    %462 = vmatprep.subr.mxu0 0.0
    %463 = vmatpush1.msra.mxu0 0.0
    %464 = vmatprep.subr.mxu0 0.0
    %465 = vmatpush1.msra.mxu0 0.0
    %466 = vmatprep.subr.mxu0 0.0
    %467 = vmatpush1.msra.mxu0 0.0
    %468 = vmatprep.subr.mxu0 0.0
    %469 = vmatpush1.msra.mxu0 0.0
    %470 = vmatprep.subr.mxu0 0.0
    %471 = vmatpush1.msra.mxu0 0.0
    %472 = vmatprep.subr.mxu0 0.0
    %473 = vmatpush1.msra.mxu0 0.0
    %474 = vmatprep.subr.mxu0 0.0
    %475 = vmatpush1.msra.mxu0 0.0
    %476 = vmatprep.subr.mxu0 0.0
    %477 = vmatpush1.msra.mxu0 0.0
    %478 = vmatprep.subr.mxu0 0.0
    %479 = vmatpush1.msra.mxu0 0.0
    %480 = vmatprep.subr.mxu0 0.0
    %481 = vmatpush1.msra.mxu0 0.0
    %482 = vmatprep.subr.mxu0 0.0
    %483 = vmatpush1.msra.mxu0 0.0
    %484 = vmatprep.mubr.f32.mxu0 0.0
    %485 = vmatmul.mubr.f32.gmra.mrb[0].mxu0 %v396
    %v486 = vpop.f32.mrb[0].mxu0
    %v487 = vadd.f32 %v418, %v486
    %v488 = vpop.f32.mrb[0].mxu0
    %489 = vdwg.mxu0
    %v490 = vtanh.pop %v487
    %v491 = vld [vmem:[#allocation11] sm:$0xff]
    %v492 = vld [vmem:[#allocation11 + $0x8] sm:$0xff]
    %v493 = vld [vmem:[#allocation11 + $0x10] sm:$0xff]
    %v494 = vld [vmem:[#allocation11 + $0x18] sm:$0xff]
    %v495 = vld [vmem:[#allocation11 + $0x20] sm:$0xff]
    %v496 = vld [vmem:[#allocation11 + $0x28] sm:$0xff]
    %v497 = vld [vmem:[#allocation11 + $0x30] sm:$0xff]
    %v498 = vld [vmem:[#allocation11 + $0x38] sm:$0xff]
    %v499 = vld [vmem:[#allocation11 + $0x40] sm:$0xff]
    %v500 = vld [vmem:[#allocation11 + $0x48] sm:$0xff]
    %v501 = vld [vmem:[#allocation11 + $0x50] sm:$0xff]
    %v502 = vld [vmem:[#allocation11 + $0x58] sm:$0xff]
    %v503 = vld [vmem:[#allocation11 + $0x60] sm:$0xff]
    %v504 = vld [vmem:[#allocation11 + $0x68] sm:$0xff]
    %v505 = vld [vmem:[#allocation11 + $0x70] sm:$0xff]
    %v506 = vld [vmem:[#allocation11 + $0x78] sm:$0xff]
    %v507 = vld [vmem:[%s10] sm:$0x1]
    %v509 = vlaneseq
    %v510 = vshrl.u32 %v509, 7
    %v511 = vsub.s32 0, %v510
    %v512 = vrot.slane %v507, %v511
    %514 = vmatprep.subr.mxu0 0.0
    %515 = vmatpush1.msra.mxu0 %v491
    %516 = vmatprep.subr.mxu0 0.0
    %517 = vmatpush1.msra.mxu0 %v492
    %518 = vmatprep.subr.mxu0 0.0
    %519 = vmatpush1.msra.mxu0 %v493
    %520 = vmatprep.subr.mxu0 0.0
    %521 = vmatpush1.msra.mxu0 %v494
    %522 = vmatprep.subr.mxu0 0.0
    %523 = vmatpush1.msra.mxu0 %v495
    %524 = vmatprep.subr.mxu0 0.0
    %525 = vmatpush1.msra.mxu0 %v496
    %526 = vmatprep.subr.mxu0 0.0
    %527 = vmatpush1.msra.mxu0 %v497
    %528 = vmatprep.subr.mxu0 0.0
    %529 = vmatpush1.msra.mxu0 %v498
    %530 = vmatprep.subr.mxu0 0.0
    %531 = vmatpush1.msra.mxu0 %v499
    %532 = vmatprep.subr.mxu0 0.0
    %533 = vmatpush1.msra.mxu0 %v500
    %534 = vmatprep.subr.mxu0 0.0
    %535 = vmatpush1.msra.mxu0 %v501
    %536 = vmatprep.subr.mxu0 0.0
    %537 = vmatpush1.msra.mxu0 %v502
    %538 = vmatprep.subr.mxu0 0.0
    %539 = vmatpush1.msra.mxu0 %v503
    %540 = vmatprep.subr.mxu0 0.0
    %541 = vmatpush1.msra.mxu0 %v504
    %542 = vmatprep.subr.mxu0 0.0
    %543 = vmatpush1.msra.mxu0 %v505
    %544 = vmatprep.subr.mxu0 0.0
    %545 = vmatpush1.msra.mxu0 %v506
    %546 = vmatprep.subr.mxu0 0.0
    %547 = vmatpush1.msra.mxu0 0.0
    %548 = vmatprep.subr.mxu0 0.0
    %549 = vmatpush1.msra.mxu0 0.0
    %550 = vmatprep.subr.mxu0 0.0
    %551 = vmatpush1.msra.mxu0 0.0
    %552 = vmatprep.subr.mxu0 0.0
    %553 = vmatpush1.msra.mxu0 0.0
    %554 = vmatprep.subr.mxu0 0.0
    %555 = vmatpush1.msra.mxu0 0.0
    %556 = vmatprep.subr.mxu0 0.0
    %557 = vmatpush1.msra.mxu0 0.0
    %558 = vmatprep.subr.mxu0 0.0
    %559 = vmatpush1.msra.mxu0 0.0
    %560 = vmatprep.subr.mxu0 0.0
    %561 = vmatpush1.msra.mxu0 0.0
    %562 = vmatprep.subr.mxu0 0.0
    %563 = vmatpush1.msra.mxu0 0.0
    %564 = vmatprep.subr.mxu0 0.0
    %565 = vmatpush1.msra.mxu0 0.0
    %566 = vmatprep.subr.mxu0 0.0
    %567 = vmatpush1.msra.mxu0 0.0
    %568 = vmatprep.subr.mxu0 0.0
    %569 = vmatpush1.msra.mxu0 0.0
    %570 = vmatprep.subr.mxu0 0.0
    %571 = vmatpush1.msra.mxu0 0.0
    %572 = vmatprep.subr.mxu0 0.0
    %573 = vmatpush1.msra.mxu0 0.0
    %574 = vmatprep.subr.mxu0 0.0
    %575 = vmatpush1.msra.mxu0 0.0
    %576 = vmatprep.subr.mxu0 0.0
    %577 = vmatpush1.msra.mxu0 0.0
    %578 = vmatprep.mubr.f32.mxu0 0.0
    %579 = vmatmul.mubr.f32.gmra.mrb[0].mxu0 %v490
    %v580 = vpop.f32.mrb[0].mxu0
    %v581 = vadd.f32 %v512, %v580
    %v582 = vpop.f32.mrb[0].mxu0
    %583 = vdwg.mxu0
    %584 = vmax.xlane.f32.xlu0 %v581
    %v585 = vpop.xlane.xlu0 %584
    %v586 = vsub.f32 %v581, %v585
    %v587 = vmul.f32 %v586, 1.442695
    %v588 = vpow.pop %v587
    %589 = vadd.xlane.f32.xlu0 %v588
    %v590 = vpop.xlane.xlu0 %589
    %v591 = vrcp.pop %v590
    %v592 = vmul.f32 %v588, %v591
    %593 = vst [vmem:[#allocation13] sm:$0xff] %v592
    // Predicated region
    $region70: #{tpu_custom_call.1} parent=1 // pred_check
      _
    $region71: #{tpu_custom_call.1} parent=1 // pred_check_branch
      %595 = sbr.rel (0) target = $region73
    $region72: #{tpu_custom_call.1} parent=1 // pred_region
      %s597 = ssub.s32 128, 128
      %598 = vsyncadd [#allocation4], %s597
      %s600 = sshll.u32 [#allocation13], 4
      %s601 = int_to_ptr.vmem [resolvable:$true] %s600
      %603 = dma.vmem_to_hbm [thread:$0]  %s601, 128, %s11, [#allocation4]
    $region73: #{tpu_custom_call.1} parent=1 // pred_fallthru
      _
    // Predicated region
    $region74: #{tpu_custom_call.1} parent=1 // pred_check
      _
    $region75: #{tpu_custom_call.1} parent=1 // pred_check_branch
      %605 = sbr.rel (0) target = $region77
    $region76: #{tpu_custom_call.1} parent=1 // pred_region
      %606 = dma.done [#allocation4], 128
    $region77: #{tpu_custom_call.1} parent=1 // pred_fallthru
      _
    %607 = vsyncpa [#allocation3], 1
    %608 = vsyncpa [#allocation6], 1
    %609 = vsyncpa [#allocation9], 1
    %610 = vsyncpa [#allocation12], 1
    %611 = vsyncpa [#allocation4], 1

// kernel: tpu_custom_call.1
$region0: #{tpu_custom_call.1}
  #allocation0 [shape = 'u32[]', space=smem, size = 0x4, offset = 0x4, fixed_abs, tag = 'smem constant byte address 0x4 - core index']
  #allocation1 [shape = 'u32[144,128]{1,0:T(1,128)}', space=vmem, size = 0x12000, scoped, tag = 'internal scratch']
  %s0 = inlined_call_operand.hbm [shape: f32[8,20], index: 0, kind: input, shape index: {}]
  %s1 = inlined_call_operand.hbm [shape: f32[20,128], index: 1, kind: input, shape index: {}]
  %s2 = inlined_call_operand.vmem [shape: f32[1,128], index: 2, kind: input, shape index: {}]
  %s3 = inlined_call_operand.hbm [shape: f32[128,128], index: 3, kind: input, shape index: {}]
  %s4 = inlined_call_operand.vmem [shape: f32[1,128], index: 4, kind: input, shape index: {}]
  %s5 = inlined_call_operand.hbm [shape: f32[128,128], index: 5, kind: input, shape index: {}]
  %s6 = inlined_call_operand.vmem [shape: f32[1,128], index: 6, kind: input, shape index: {}]
  %s7 = inlined_call_operand.hbm [shape: f32[128,128], index: 7, kind: input, shape index: {}]
  %s8 = inlined_call_operand.vmem [shape: f32[1,128], index: 8, kind: input, shape index: {}]
  %s9 = inlined_call_operand.hbm [shape: f32[128,128], index: 9, kind: input, shape index: {}]
  %s10 = inlined_call_operand.vmem [shape: f32[1,128], index: 10, kind: input, shape index: {}]
  %s11 = inlined_call_operand.hbm [shape: f32[8,128], index: 11, kind: output, shape index: {}]
  %s12 = sld [smem:[#allocation0]]
  $region78: #{tpu_custom_call.1} parent=0
    _
  %s14 = ssub.s32 1, %s12
  %s15 = scalar_select 0, %s14, %s12
  $region1: #{tpu_custom_call.1} parent=0
    #allocation2 [shape = 'u8[4096]{0}', space=vmem, size = 0x1000, scoped, tag = 'input window, operand 0, single buffered']
    #allocation3 [shape = 's32[1]{0}', space=sflag, size = 0x4, scoped, tag = 'scoped memory for tpu_custom_call.1']
    #allocation4 [shape = 's32[1]{0}', space=sflag, size = 0x4, scoped, tag = 'scoped memory for tpu_custom_call.1']
    #allocation5 [shape = 'u8[12288]{0}', space=vmem, size = 0x3000, scoped, tag = 'input window, operand 1, single buffered']
    #allocation6 [shape = 's32[1]{0}', space=sflag, size = 0x4, scoped, tag = 'scoped memory for tpu_custom_call.1']
    #allocation7 [shape = 'u8[65536]{0}', space=vmem, size = 0x10000, scoped, tag = 'input window, operand 3, single buffered']
    #allocation8 [shape = 'u8[65536]{0}', space=vmem, size = 0x10000, scoped, tag = 'input window, operand 5, single buffered']
    #allocation9 [shape = 's32[1]{0}', space=sflag, size = 0x4, scoped, tag = 'scoped memory for tpu_custom_call.1']
    #allocation10 [shape = 'u8[65536]{0}', space=vmem, size = 0x10000, scoped, tag = 'input window, operand 7, single buffered']
    #allocation11 [shape = 'u8[65536]{0}', space=vmem, size = 0x10000, scoped, tag = 'input window, operand 9, single buffered']
    #allocation12 [shape = 's32[1]{0}', space=sflag, size = 0x4, scoped, tag = 'scoped memory for tpu_custom_call.1']
    #allocation13 [shape = 'u8[4096]{0}', space=vmem, size = 0x1000, scoped, tag = 'output window, operand 0, single buffered']
    %16 = vsyncpa [#allocation3], 0
    %17 = vsyncpa [#allocation6], 0
    %18 = vsyncpa [#allocation9], 0
    %19 = vsyncpa [#allocation12], 0
    %20 = vsyncpa [#allocation4], 0
    // Predicated region
    $region2: #{tpu_custom_call.1} parent=1 // pred_check
      _
    $region3: #{tpu_custom_call.1} parent=1 // pred_check_branch
      %22 = sbr.rel (0) target = $region5
    $region4: #{tpu_custom_call.1} parent=1 // pred_region
      %s24 = ssub.s32 128, 128
      %25 = vsyncadd [#allocation3], %s24
      %s27 = sshll.u32 [#allocation2], 4
      %s28 = int_to_ptr.vmem [resolvable:$true] %s27
      %30 = dma.hbm_to_vmem [thread:$0]  %s0, 128, %s28, [#allocation3]
    $region5: #{tpu_custom_call.1} parent=1 // pred_fallthru
      _
    // Predicated region
    $region6: #{tpu_custom_call.1} parent=1 // pred_check
      _
    $region7: #{tpu_custom_call.1} parent=1 // pred_check_branch
      %32 = sbr.rel (0) target = $region9
    $region8: #{tpu_custom_call.1} parent=1 // pred_region
      %s34 = ssub.s32 384, 384
      %35 = vsyncadd [#allocation6], %s34
      %s36 = sshll.u32 [#allocation5], 4
      %s37 = int_to_ptr.vmem [resolvable:$true] %s36
      %42 = dma.hbm_to_vmem [thread:$0]  %s1, 384, %s37, [#allocation6], 128, 128, 8
    $region9: #{tpu_custom_call.1} parent=1 // pred_fallthru
      _
    // Predicated region
    $region10: #{tpu_custom_call.1} parent=1 // pred_check
      _
    $region11: #{tpu_custom_call.1} parent=1 // pred_check_branch
      %44 = sbr.rel (0) target = $region13
    $region12: #{tpu_custom_call.1} parent=1 // pred_region
      _
    $region13: #{tpu_custom_call.1} parent=1 // pred_fallthru
      _
    // Predicated region
    $region14: #{tpu_custom_call.1} parent=1 // pred_check
      _
    $region15: #{tpu_custom_call.1} parent=1 // pred_check_branch
      %46 = sbr.rel (0) target = $region17
    $region16: #{tpu_custom_call.1} parent=1 // pred_region
      %s48 = ssub.s32 2048, 2048
      %49 = vsyncadd [#allocation6], %s48
      %s50 = sshll.u32 [#allocation7], 4
      %s51 = int_to_ptr.vmem [resolvable:$true] %s50
      %56 = dma.hbm_to_vmem [thread:$0]  %s3, 2048, %s51, [#allocation6], 128, 128, 8
    $region17: #{tpu_custom_call.1} parent=1 // pred_fallthru
      _
    // Predicated region
    $region18: #{tpu_custom_call.1} parent=1 // pred_check
      _
    $region19: #{tpu_custom_call.1} parent=1 // pred_check_branch
      %58 = sbr.rel (0) target = $region21
    $region20: #{tpu_custom_call.1} parent=1 // pred_region
      _
    $region21: #{tpu_custom_call.1} parent=1 // pred_fallthru
      _
    // Predicated region
    $region22: #{tpu_custom_call.1} parent=1 // pred_check
      _
    $region23: #{tpu_custom_call.1} parent=1 // pred_check_branch
      %60 = sbr.rel (0) target = $region25
    $region24: #{tpu_custom_call.1} parent=1 // pred_region
      %s62 = ssub.s32 2048, 2048
      %63 = vsyncadd [#allocation9], %s62
      %s64 = sshll.u32 [#allocation8], 4
      %s65 = int_to_ptr.vmem [resolvable:$true] %s64
      %70 = dma.hbm_to_vmem [thread:$0]  %s5, 2048, %s65, [#allocation9], 128, 128, 8
    $region25: #{tpu_custom_call.1} parent=1 // pred_fallthru
      _
    // Predicated region
    $region26: #{tpu_custom_call.1} parent=1 // pred_check
      _
    $region27: #{tpu_custom_call.1} parent=1 // pred_check_branch
      %72 = sbr.rel (0) target = $region29
    $region28: #{tpu_custom_call.1} parent=1 // pred_region
      _
    $region29: #{tpu_custom_call.1} parent=1 // pred_fallthru
      _
    // Predicated region
    $region30: #{tpu_custom_call.1} parent=1 // pred_check
      _
    $region31: #{tpu_custom_call.1} parent=1 // pred_check_branch
      %74 = sbr.rel (0) target = $region33
    $region32: #{tpu_custom_call.1} parent=1 // pred_region
      %s76 = ssub.s32 2048, 2048
      %77 = vsyncadd [#allocation9], %s76
      %s78 = sshll.u32 [#allocation10], 4
      %s79 = int_to_ptr.vmem [resolvable:$true] %s78
      %84 = dma.hbm_to_vmem [thread:$0]  %s7, 2048, %s79, [#allocation9], 128, 128, 8
    $region33: #{tpu_custom_call.1} parent=1 // pred_fallthru
      _
    // Predicated region
    $region34: #{tpu_custom_call.1} parent=1 // pred_check
      _
    $region35: #{tpu_custom_call.1} parent=1 // pred_check_branch
      %86 = sbr.rel (0) target = $region37
    $region36: #{tpu_custom_call.1} parent=1 // pred_region
      _
    $region37: #{tpu_custom_call.1} parent=1 // pred_fallthru
      _
    // Predicated region
    $region38: #{tpu_custom_call.1} parent=1 // pred_check
      _
    $region39: #{tpu_custom_call.1} parent=1 // pred_check_branch
      %88 = sbr.rel (0) target = $region41
    $region40: #{tpu_custom_call.1} parent=1 // pred_region
      %s90 = ssub.s32 2048, 2048
      %91 = vsyncadd [#allocation12], %s90
      %s92 = sshll.u32 [#allocation11], 4
      %s93 = int_to_ptr.vmem [resolvable:$true] %s92
      %98 = dma.hbm_to_vmem [thread:$0]  %s9, 2048, %s93, [#allocation12], 128, 128, 8
    $region41: #{tpu_custom_call.1} parent=1 // pred_fallthru
      _
    // Predicated region
    $region42: #{tpu_custom_call.1} parent=1 // pred_check
      _
    $region43: #{tpu_custom_call.1} parent=1 // pred_check_branch
      %100 = sbr.rel (0) target = $region45
    $region44: #{tpu_custom_call.1} parent=1 // pred_region
      _
    $region45: #{tpu_custom_call.1} parent=1 // pred_fallthru
      _
    // Predicated region
    $region46: #{tpu_custom_call.1} parent=1 // pred_check
      _
    $region47: #{tpu_custom_call.1} parent=1 // pred_check_branch
      %102 = sbr.rel (0) target = $region49
    $region48: #{tpu_custom_call.1} parent=1 // pred_region
      %103 = dma.done [#allocation3], 128
    $region49: #{tpu_custom_call.1} parent=1 // pred_fallthru
      _
    // Predicated region
    $region50: #{tpu_custom_call.1} parent=1 // pred_check
      _
    $region51: #{tpu_custom_call.1} parent=1 // pred_check_branch
      %105 = sbr.rel (0) target = $region53
    $region52: #{tpu_custom_call.1} parent=1 // pred_region
      %106 = dma.done [#allocation6], 384
    $region53: #{tpu_custom_call.1} parent=1 // pred_fallthru
      _
    // Predicated region
    $region54: #{tpu_custom_call.1} parent=1 // pred_check
      _
    $region55: #{tpu_custom_call.1} parent=1 // pred_check_branch
      %108 = sbr.rel (0) target = $region57
    $region56: #{tpu_custom_call.1} parent=1 // pred_region
      %109 = dma.done [#allocation6], 2048
    $region57: #{tpu_custom_call.1} parent=1 // pred_fallthru
      _
    // Predicated region
    $region58: #{tpu_custom_call.1} parent=1 // pred_check
      _
    $region59: #{tpu_custom_call.1} parent=1 // pred_check_branch
      %111 = sbr.rel (0) target = $region61
    $region60: #{tpu_custom_call.1} parent=1 // pred_region
      %112 = dma.done [#allocation9], 2048
    $region61: #{tpu_custom_call.1} parent=1 // pred_fallthru
      _
    // Predicated region
    $region62: #{tpu_custom_call.1} parent=1 // pred_check
      _
    $region63: #{tpu_custom_call.1} parent=1 // pred_check_branch
      %114 = sbr.rel (0) target = $region65
    $region64: #{tpu_custom_call.1} parent=1 // pred_region
      %115 = dma.done [#allocation9], 2048
    $region65: #{tpu_custom_call.1} parent=1 // pred_fallthru
      _
    // Predicated region
    $region66: #{tpu_custom_call.1} parent=1 // pred_check
      _
    $region67: #{tpu_custom_call.1} parent=1 // pred_check_branch
      %117 = sbr.rel (0) target = $region69
    $region68: #{tpu_custom_call.1} parent=1 // pred_region
      %118 = dma.done [#allocation12], 2048
    $region69: #{tpu_custom_call.1} parent=1 // pred_fallthru
      _
    %v119 = vld [vmem:[#allocation2] sm:$0xff]
    %v120 = vld [vmem:[#allocation5] sm:$0xff]
    %v121 = vld [vmem:[#allocation5 + $0x8] sm:$0xff]
    %v122 = vld [vmem:[#allocation5 + $0x10] sm:$0xf]
    %v123 = vld [vmem:[%s2] sm:$0x1]
    %v125 = vlaneseq
    %v126 = vshrl.u32 %v125, 7
    %v127 = vsub.s32 0, %v126
    %v128 = vrot.slane %v123, %v127
    %vm130 = vcmask 162816
    %v132 = vsel %vm130, %v119, 0
    %vm134 = vcmask 1043456
    %v136 = vsel %vm134, %v122, 0
    %138 = vmatprep.subr.mxu0 0.0
    %139 = vmatpush1.msra.mxu0 %v120
    %140 = vmatprep.subr.mxu0 0.0
    %141 = vmatpush1.msra.mxu0 %v121
    %142 = vmatprep.subr.mxu0 0.0
    %143 = vmatpush1.msra.mxu0 %v136
    %144 = vmatprep.subr.mxu0 0.0
    %145 = vmatpush1.msra.mxu0 0.0
    %146 = vmatprep.subr.mxu0 0.0
    %147 = vmatpush1.msra.mxu0 0.0
    %148 = vmatprep.subr.mxu0 0.0
    %149 = vmatpush1.msra.mxu0 0.0
    %150 = vmatprep.subr.mxu0 0.0
    %151 = vmatpush1.msra.mxu0 0.0
    %152 = vmatprep.subr.mxu0 0.0
    %153 = vmatpush1.msra.mxu0 0.0
    %154 = vmatprep.subr.mxu0 0.0
    %155 = vmatpush1.msra.mxu0 0.0
    %156 = vmatprep.subr.mxu0 0.0
    %157 = vmatpush1.msra.mxu0 0.0
    %158 = vmatprep.subr.mxu0 0.0
    %159 = vmatpush1.msra.mxu0 0.0
    %160 = vmatprep.subr.mxu0 0.0
    %161 = vmatpush1.msra.mxu0 0.0
    %162 = vmatprep.subr.mxu0 0.0
    %163 = vmatpush1.msra.mxu0 0.0
    %164 = vmatprep.subr.mxu0 0.0
    %165 = vmatpush1.msra.mxu0 0.0
    %166 = vmatprep.subr.mxu0 0.0
    %167 = vmatpush1.msra.mxu0 0.0
    %168 = vmatprep.subr.mxu0 0.0
    %169 = vmatpush1.msra.mxu0 0.0
    %170 = vmatprep.subr.mxu0 0.0
    %171 = vmatpush1.msra.mxu0 0.0
    %172 = vmatprep.subr.mxu0 0.0
    %173 = vmatpush1.msra.mxu0 0.0
    %174 = vmatprep.subr.mxu0 0.0
    %175 = vmatpush1.msra.mxu0 0.0
    %176 = vmatprep.subr.mxu0 0.0
    %177 = vmatpush1.msra.mxu0 0.0
    %178 = vmatprep.subr.mxu0 0.0
    %179 = vmatpush1.msra.mxu0 0.0
    %180 = vmatprep.subr.mxu0 0.0
    %181 = vmatpush1.msra.mxu0 0.0
    %182 = vmatprep.subr.mxu0 0.0
    %183 = vmatpush1.msra.mxu0 0.0
    %184 = vmatprep.subr.mxu0 0.0
    %185 = vmatpush1.msra.mxu0 0.0
    %186 = vmatprep.subr.mxu0 0.0
    %187 = vmatpush1.msra.mxu0 0.0
    %188 = vmatprep.subr.mxu0 0.0
    %189 = vmatpush1.msra.mxu0 0.0
    %190 = vmatprep.subr.mxu0 0.0
    %191 = vmatpush1.msra.mxu0 0.0
    %192 = vmatprep.subr.mxu0 0.0
    %193 = vmatpush1.msra.mxu0 0.0
    %194 = vmatprep.subr.mxu0 0.0
    %195 = vmatpush1.msra.mxu0 0.0
    %196 = vmatprep.subr.mxu0 0.0
    %197 = vmatpush1.msra.mxu0 0.0
    %198 = vmatprep.subr.mxu0 0.0
    %199 = vmatpush1.msra.mxu0 0.0
    %200 = vmatprep.subr.mxu0 0.0
    %201 = vmatpush1.msra.mxu0 0.0
    %202 = vmatprep.mubr.f32.mxu0 0.0
    %203 = vmatmul.mubr.f32.gmra.mrb[0].mxu0 %v132
    %v204 = vpop.f32.mrb[0].mxu0
    %v205 = vadd.f32 %v128, %v204
    %v206 = vpop.f32.mrb[0].mxu0
    %207 = vdwg.mxu0
    %v208 = vtanh.pop %v205
    %v209 = vld [vmem:[#allocation7] sm:$0xff]
    %v210 = vld [vmem:[#allocation7 + $0x8] sm:$0xff]
    %v211 = vld [vmem:[#allocation7 + $0x10] sm:$0xff]
    %v212 = vld [vmem:[#allocation7 + $0x18] sm:$0xff]
    %v213 = vld [vmem:[#allocation7 + $0x20] sm:$0xff]
    %v214 = vld [vmem:[#allocation7 + $0x28] sm:$0xff]
    %v215 = vld [vmem:[#allocation7 + $0x30] sm:$0xff]
    %v216 = vld [vmem:[#allocation7 + $0x38] sm:$0xff]
    %v217 = vld [vmem:[#allocation7 + $0x40] sm:$0xff]
    %v218 = vld [vmem:[#allocation7 + $0x48] sm:$0xff]
    %v219 = vld [vmem:[#allocation7 + $0x50] sm:$0xff]
    %v220 = vld [vmem:[#allocation7 + $0x58] sm:$0xff]
    %v221 = vld [vmem:[#allocation7 + $0x60] sm:$0xff]
    %v222 = vld [vmem:[#allocation7 + $0x68] sm:$0xff]
    %v223 = vld [vmem:[#allocation7 + $0x70] sm:$0xff]
    %v224 = vld [vmem:[#allocation7 + $0x78] sm:$0xff]
    %v225 = vld [vmem:[%s4] sm:$0x1]
    %v227 = vlaneseq
    %v228 = vshrl.u32 %v227, 7
    %v229 = vsub.s32 0, %v228
    %v230 = vrot.slane %v225, %v229
    %232 = vmatprep.subr.mxu0 0.0
    %233 = vmatpush1.msra.mxu0 %v209
    %234 = vmatprep.subr.mxu0 0.0
    %235 = vmatpush1.msra.mxu0 %v210
    %236 = vmatprep.subr.mxu0 0.0
    %237 = vmatpush1.msra.mxu0 %v211
    %238 = vmatprep.subr.mxu0 0.0
    %239 = vmatpush1.msra.mxu0 %v212
    %240 = vmatprep.subr.mxu0 0.0
    %241 = vmatpush1.msra.mxu0 %v213
    %242 = vmatprep.subr.mxu0 0.0
    %243 = vmatpush1.msra.mxu0 %v214
    %244 = vmatprep.subr.mxu0 0.0
    %245 = vmatpush1.msra.mxu0 %v215
    %246 = vmatprep.subr.mxu0 0.0
    %247 = vmatpush1.msra.mxu0 %v216
    %248 = vmatprep.subr.mxu0 0.0
    %249 = vmatpush1.msra.mxu0 %v217
    %250 = vmatprep.subr.mxu0 0.0
    %251 = vmatpush1.msra.mxu0 %v218
    %252 = vmatprep.subr.mxu0 0.0
    %253 = vmatpush1.msra.mxu0 %v219
    %254 = vmatprep.subr.mxu0 0.0
    %255 = vmatpush1.msra.mxu0 %v220
    %256 = vmatprep.subr.mxu0 0.0
    %257 = vmatpush1.msra.mxu0 %v221
    %258 = vmatprep.subr.mxu0 0.0
    %259 = vmatpush1.msra.mxu0 %v222
    %260 = vmatprep.subr.mxu0 0.0
    %261 = vmatpush1.msra.mxu0 %v223
    %262 = vmatprep.subr.mxu0 0.0
    %263 = vmatpush1.msra.mxu0 %v224
    %264 = vmatprep.subr.mxu0 0.0
    %265 = vmatpush1.msra.mxu0 0.0
    %266 = vmatprep.subr.mxu0 0.0
    %267 = vmatpush1.msra.mxu0 0.0
    %268 = vmatprep.subr.mxu0 0.0
    %269 = vmatpush1.msra.mxu0 0.0
    %270 = vmatprep.subr.mxu0 0.0
    %271 = vmatpush1.msra.mxu0 0.0
    %272 = vmatprep.subr.mxu0 0.0
    %273 = vmatpush1.msra.mxu0 0.0
    %274 = vmatprep.subr.mxu0 0.0
    %275 = vmatpush1.msra.mxu0 0.0
    %276 = vmatprep.subr.mxu0 0.0
    %277 = vmatpush1.msra.mxu0 0.0
    %278 = vmatprep.subr.mxu0 0.0
    %279 = vmatpush1.msra.mxu0 0.0
    %280 = vmatprep.subr.mxu0 0.0
    %281 = vmatpush1.msra.mxu0 0.0
    %282 = vmatprep.subr.mxu0 0.0
    %283 = vmatpush1.msra.mxu0 0.0
    %284 = vmatprep.subr.mxu0 0.0
    %285 = vmatpush1.msra.mxu0 0.0
    %286 = vmatprep.subr.mxu0 0.0
    %287 = vmatpush1.msra.mxu0 0.0
    %288 = vmatprep.subr.mxu0 0.0
    %289 = vmatpush1.msra.mxu0 0.0
    %290 = vmatprep.subr.mxu0 0.0
    %291 = vmatpush1.msra.mxu0 0.0
    %292 = vmatprep.subr.mxu0 0.0
    %293 = vmatpush1.msra.mxu0 0.0
    %294 = vmatprep.subr.mxu0 0.0
    %295 = vmatpush1.msra.mxu0 0.0
    %296 = vmatprep.mubr.f32.mxu0 0.0
    %297 = vmatmul.mubr.f32.gmra.mrb[0].mxu0 %v208
    %v298 = vpop.f32.mrb[0].mxu0
    %v299 = vadd.f32 %v230, %v298
    %v300 = vpop.f32.mrb[0].mxu0
    %301 = vdwg.mxu0
    %v302 = vtanh.pop %v299
    %v303 = vld [vmem:[#allocation8] sm:$0xff]
    %v304 = vld [vmem:[#allocation8 + $0x8] sm:$0xff]
    %v305 = vld [vmem:[#allocation8 + $0x10] sm:$0xff]
    %v306 = vld [vmem:[#allocation8 + $0x18] sm:$0xff]
    %v307 = vld [vmem:[#allocation8 + $0x20] sm:$0xff]
    %v308 = vld [vmem:[#allocation8 + $0x28] sm:$0xff]
    %v309 = vld [vmem:[#allocation8 + $0x30] sm:$0xff]
    %v310 = vld [vmem:[#allocation8 + $0x38] sm:$0xff]
    %v311 = vld [vmem:[#allocation8 + $0x40] sm:$0xff]
    %v312 = vld [vmem:[#allocation8 + $0x48] sm:$0xff]
    %v313 = vld [vmem:[#allocation8 + $0x50] sm:$0xff]
    %v314 = vld [vmem:[#allocation8 + $0x58] sm:$0xff]
    %v315 = vld [vmem:[#allocation8 + $0x60] sm:$0xff]
    %v316 = vld [vmem:[#allocation8 + $0x68] sm:$0xff]
    %v317 = vld [vmem:[#allocation8 + $0x70] sm:$0xff]
    %v318 = vld [vmem:[#allocation8 + $0x78] sm:$0xff]
    %v319 = vld [vmem:[%s6] sm:$0x1]
    %v321 = vlaneseq
    %v322 = vshrl.u32 %v321, 7
    %v323 = vsub.s32 0, %v322
    %v324 = vrot.slane %v319, %v323
    %326 = vmatprep.subr.mxu0 0.0
    %327 = vmatpush1.msra.mxu0 %v303
    %328 = vmatprep.subr.mxu0 0.0
    %329 = vmatpush1.msra.mxu0 %v304
    %330 = vmatprep.subr.mxu0 0.0
    %331 = vmatpush1.msra.mxu0 %v305
    %332 = vmatprep.subr.mxu0 0.0
    %333 = vmatpush1.msra.mxu0 %v306
    %334 = vmatprep.subr.mxu0 0.0
    %335 = vmatpush1.msra.mxu0 %v307
    %336 = vmatprep.subr.mxu0 0.0
    %337 = vmatpush1.msra.mxu0 %v308
    %338 = vmatprep.subr.mxu0 0.0
    %339 = vmatpush1.msra.mxu0 %v309
    %340 = vmatprep.subr.mxu0 0.0
    %341 = vmatpush1.msra.mxu0 %v310
    %342 = vmatprep.subr.mxu0 0.0
    %343 = vmatpush1.msra.mxu0 %v311
    %344 = vmatprep.subr.mxu0 0.0
    %345 = vmatpush1.msra.mxu0 %v312
    %346 = vmatprep.subr.mxu0 0.0
    %347 = vmatpush1.msra.mxu0 %v313
    %348 = vmatprep.subr.mxu0 0.0
    %349 = vmatpush1.msra.mxu0 %v314
    %350 = vmatprep.subr.mxu0 0.0
    %351 = vmatpush1.msra.mxu0 %v315
    %352 = vmatprep.subr.mxu0 0.0
    %353 = vmatpush1.msra.mxu0 %v316
    %354 = vmatprep.subr.mxu0 0.0
    %355 = vmatpush1.msra.mxu0 %v317
    %356 = vmatprep.subr.mxu0 0.0
    %357 = vmatpush1.msra.mxu0 %v318
    %358 = vmatprep.subr.mxu0 0.0
    %359 = vmatpush1.msra.mxu0 0.0
    %360 = vmatprep.subr.mxu0 0.0
    %361 = vmatpush1.msra.mxu0 0.0
    %362 = vmatprep.subr.mxu0 0.0
    %363 = vmatpush1.msra.mxu0 0.0
    %364 = vmatprep.subr.mxu0 0.0
    %365 = vmatpush1.msra.mxu0 0.0
    %366 = vmatprep.subr.mxu0 0.0
    %367 = vmatpush1.msra.mxu0 0.0
    %368 = vmatprep.subr.mxu0 0.0
    %369 = vmatpush1.msra.mxu0 0.0
    %370 = vmatprep.subr.mxu0 0.0
    %371 = vmatpush1.msra.mxu0 0.0
    %372 = vmatprep.subr.mxu0 0.0
    %373 = vmatpush1.msra.mxu0 0.0
    %374 = vmatprep.subr.mxu0 0.0
    %375 = vmatpush1.msra.mxu0 0.0
    %376 = vmatprep.subr.mxu0 0.0
    %377 = vmatpush1.msra.mxu0 0.0
    %378 = vmatprep.subr.mxu0 0.0
    %379 = vmatpush1.msra.mxu0 0.0
    %380 = vmatprep.subr.mxu0 0.0
    %381 = vmatpush1.msra.mxu0 0.0
    %382 = vmatprep.subr.mxu0 0.0
    %383 = vmatpush1.msra.mxu0 0.0
    %384 = vmatprep.subr.mxu0 0.0
    %385 = vmatpush1.msra.mxu0 0.0
    %386 = vmatprep.subr.mxu0 0.0
    %387 = vmatpush1.msra.mxu0 0.0
    %388 = vmatprep.subr.mxu0 0.0
    %389 = vmatpush1.msra.mxu0 0.0
    %390 = vmatprep.mubr.f32.mxu0 0.0
    %391 = vmatmul.mubr.f32.gmra.mrb[0].mxu0 %v302
    %v392 = vpop.f32.mrb[0].mxu0
    %v393 = vadd.f32 %v324, %v392
    %v394 = vpop.f32.mrb[0].mxu0
    %395 = vdwg.mxu0
    %v396 = vtanh.pop %v393
    %v397 = vld [vmem:[#allocation10] sm:$0xff]
    %v398 = vld [vmem:[#allocation10 + $0x8] sm:$0xff]
    %v399 = vld [vmem:[#allocation10 + $0x10] sm:$0xff]
    %v400 = vld [vmem:[#allocation10 + $0x18] sm:$0xff]
    %v401 = vld [vmem:[#allocation10 + $0x20] sm:$0xff]
    %v402 = vld [vmem:[#allocation10 + $0x28] sm:$0xff]
    %v403 = vld [vmem:[#allocation10 + $0x30] sm:$0xff]
    %v404 = vld [vmem:[#allocation10 + $0x38] sm:$0xff]
    %v405 = vld [vmem:[#allocation10 + $0x40] sm:$0xff]
    %v406 = vld [vmem:[#allocation10 + $0x48] sm:$0xff]
    %v407 = vld [vmem:[#allocation10 + $0x50] sm:$0xff]
    %v408 = vld [vmem:[#allocation10 + $0x58] sm:$0xff]
    %v409 = vld [vmem:[#allocation10 + $0x60] sm:$0xff]
    %v410 = vld [vmem:[#allocation10 + $0x68] sm:$0xff]
    %v411 = vld [vmem:[#allocation10 + $0x70] sm:$0xff]
    %v412 = vld [vmem:[#allocation10 + $0x78] sm:$0xff]
    %v413 = vld [vmem:[%s8] sm:$0x1]
    %v415 = vlaneseq
    %v416 = vshrl.u32 %v415, 7
    %v417 = vsub.s32 0, %v416
    %v418 = vrot.slane %v413, %v417
    %420 = vmatprep.subr.mxu0 0.0
    %421 = vmatpush1.msra.mxu0 %v397
    %422 = vmatprep.subr.mxu0 0.0
    %423 = vmatpush1.msra.mxu0 %v398
    %424 = vmatprep.subr.mxu0 0.0
    %425 = vmatpush1.msra.mxu0 %v399
    %426 = vmatprep.subr.mxu0 0.0
    %427 = vmatpush1.msra.mxu0 %v400
    %428 = vmatprep.subr.mxu0 0.0
    %429 = vmatpush1.msra.mxu0 %v401
    %430 = vmatprep.subr.mxu0 0.0
    %431 = vmatpush1.msra.mxu0 %v402
    %432 = vmatprep.subr.mxu0 0.0
    %433 = vmatpush1.msra.mxu0 %v403
    %434 = vmatprep.subr.mxu0 0.0
    %435 = vmatpush1.msra.mxu0 %v404
    %436 = vmatprep.subr.mxu0 0.0
    %437 = vmatpush1.msra.mxu0 %v405
    %438 = vmatprep.subr.mxu0 0.0
    %439 = vmatpush1.msra.mxu0 %v406
    %440 = vmatprep.subr.mxu0 0.0
    %441 = vmatpush1.msra.mxu0 %v407
    %442 = vmatprep.subr.mxu0 0.0
    %443 = vmatpush1.msra.mxu0 %v408
    %444 = vmatprep.subr.mxu0 0.0
    %445 = vmatpush1.msra.mxu0 %v409
    %446 = vmatprep.subr.mxu0 0.0
    %447 = vmatpush1.msra.mxu0 %v410
    %448 = vmatprep.subr.mxu0 0.0
    %449 = vmatpush1.msra.mxu0 %v411
    %450 = vmatprep.subr.mxu0 0.0
    %451 = vmatpush1.msra.mxu0 %v412
    %452 = vmatprep.subr.mxu0 0.0
    %453 = vmatpush1.msra.mxu0 0.0
    %454 = vmatprep.subr.mxu0 0.0
    %455 = vmatpush1.msra.mxu0 0.0
    %456 = vmatprep.subr.mxu0 0.0
    %457 = vmatpush1.msra.mxu0 0.0
    %458 = vmatprep.subr.mxu0 0.0
    %459 = vmatpush1.msra.mxu0 0.0
    %460 = vmatprep.subr.mxu0 0.0
    %461 = vmatpush1.msra.mxu0 0.0
    %462 = vmatprep.subr.mxu0 0.0
    %463 = vmatpush1.msra.mxu0 0.0
    %464 = vmatprep.subr.mxu0 0.0
    %465 = vmatpush1.msra.mxu0 0.0
    %466 = vmatprep.subr.mxu0 0.0
    %467 = vmatpush1.msra.mxu0 0.0
    %468 = vmatprep.subr.mxu0 0.0
    %469 = vmatpush1.msra.mxu0 0.0
    %470 = vmatprep.subr.mxu0 0.0
    %471 = vmatpush1.msra.mxu0 0.0
    %472 = vmatprep.subr.mxu0 0.0
    %473 = vmatpush1.msra.mxu0 0.0
    %474 = vmatprep.subr.mxu0 0.0
    %475 = vmatpush1.msra.mxu0 0.0
    %476 = vmatprep.subr.mxu0 0.0
    %477 = vmatpush1.msra.mxu0 0.0
    %478 = vmatprep.subr.mxu0 0.0
    %479 = vmatpush1.msra.mxu0 0.0
    %480 = vmatprep.subr.mxu0 0.0
    %481 = vmatpush1.msra.mxu0 0.0
    %482 = vmatprep.subr.mxu0 0.0
    %483 = vmatpush1.msra.mxu0 0.0
    %484 = vmatprep.mubr.f32.mxu0 0.0
    %485 = vmatmul.mubr.f32.gmra.mrb[0].mxu0 %v396
    %v486 = vpop.f32.mrb[0].mxu0
    %v487 = vadd.f32 %v418, %v486
    %v488 = vpop.f32.mrb[0].mxu0
    %489 = vdwg.mxu0
    %v490 = vtanh.pop %v487
    %v491 = vld [vmem:[#allocation11] sm:$0xff]
    %v492 = vld [vmem:[#allocation11 + $0x8] sm:$0xff]
    %v493 = vld [vmem:[#allocation11 + $0x10] sm:$0xff]
    %v494 = vld [vmem:[#allocation11 + $0x18] sm:$0xff]
    %v495 = vld [vmem:[#allocation11 + $0x20] sm:$0xff]
    %v496 = vld [vmem:[#allocation11 + $0x28] sm:$0xff]
    %v497 = vld [vmem:[#allocation11 + $0x30] sm:$0xff]
    %v498 = vld [vmem:[#allocation11 + $0x38] sm:$0xff]
    %v499 = vld [vmem:[#allocation11 + $0x40] sm:$0xff]
    %v500 = vld [vmem:[#allocation11 + $0x48] sm:$0xff]
    %v501 = vld [vmem:[#allocation11 + $0x50] sm:$0xff]
    %v502 = vld [vmem:[#allocation11 + $0x58] sm:$0xff]
    %v503 = vld [vmem:[#allocation11 + $0x60] sm:$0xff]
    %v504 = vld [vmem:[#allocation11 + $0x68] sm:$0xff]
    %v505 = vld [vmem:[#allocation11 + $0x70] sm:$0xff]
    %v506 = vld [vmem:[#allocation11 + $0x78] sm:$0xff]
    %v507 = vld [vmem:[%s10] sm:$0x1]
    %v509 = vlaneseq
    %v510 = vshrl.u32 %v509, 7
    %v511 = vsub.s32 0, %v510
    %v512 = vrot.slane %v507, %v511
    %514 = vmatprep.subr.mxu0 0.0
    %515 = vmatpush1.msra.mxu0 %v491
    %516 = vmatprep.subr.mxu0 0.0
    %517 = vmatpush1.msra.mxu0 %v492
    %518 = vmatprep.subr.mxu0 0.0
    %519 = vmatpush1.msra.mxu0 %v493
    %520 = vmatprep.subr.mxu0 0.0
    %521 = vmatpush1.msra.mxu0 %v494
    %522 = vmatprep.subr.mxu0 0.0
    %523 = vmatpush1.msra.mxu0 %v495
    %524 = vmatprep.subr.mxu0 0.0
    %525 = vmatpush1.msra.mxu0 %v496
    %526 = vmatprep.subr.mxu0 0.0
    %527 = vmatpush1.msra.mxu0 %v497
    %528 = vmatprep.subr.mxu0 0.0
    %529 = vmatpush1.msra.mxu0 %v498
    %530 = vmatprep.subr.mxu0 0.0
    %531 = vmatpush1.msra.mxu0 %v499
    %532 = vmatprep.subr.mxu0 0.0
    %533 = vmatpush1.msra.mxu0 %v500
    %534 = vmatprep.subr.mxu0 0.0
    %535 = vmatpush1.msra.mxu0 %v501
    %536 = vmatprep.subr.mxu0 0.0
    %537 = vmatpush1.msra.mxu0 %v502
    %538 = vmatprep.subr.mxu0 0.0
    %539 = vmatpush1.msra.mxu0 %v503
    %540 = vmatprep.subr.mxu0 0.0
    %541 = vmatpush1.msra.mxu0 %v504
    %542 = vmatprep.subr.mxu0 0.0
    %543 = vmatpush1.msra.mxu0 %v505
    %544 = vmatprep.subr.mxu0 0.0
    %545 = vmatpush1.msra.mxu0 %v506
    %546 = vmatprep.subr.mxu0 0.0
    %547 = vmatpush1.msra.mxu0 0.0
    %548 = vmatprep.subr.mxu0 0.0
    %549 = vmatpush1.msra.mxu0 0.0
    %550 = vmatprep.subr.mxu0 0.0
    %551 = vmatpush1.msra.mxu0 0.0
    %552 = vmatprep.subr.mxu0 0.0
    %553 = vmatpush1.msra.mxu0 0.0
    %554 = vmatprep.subr.mxu0 0.0
    %555 = vmatpush1.msra.mxu0 0.0
    %556 = vmatprep.subr.mxu0 0.0
    %557 = vmatpush1.msra.mxu0 0.0
    %558 = vmatprep.subr.mxu0 0.0
    %559 = vmatpush1.msra.mxu0 0.0
    %560 = vmatprep.subr.mxu0 0.0
    %561 = vmatpush1.msra.mxu0 0.0
    %562 = vmatprep.subr.mxu0 0.0
    %563 = vmatpush1.msra.mxu0 0.0
    %564 = vmatprep.subr.mxu0 0.0
    %565 = vmatpush1.msra.mxu0 0.0
    %566 = vmatprep.subr.mxu0 0.0
    %567 = vmatpush1.msra.mxu0 0.0
    %568 = vmatprep.subr.mxu0 0.0
    %569 = vmatpush1.msra.mxu0 0.0
    %570 = vmatprep.subr.mxu0 0.0
    %571 = vmatpush1.msra.mxu0 0.0
    %572 = vmatprep.subr.mxu0 0.0
    %573 = vmatpush1.msra.mxu0 0.0
    %574 = vmatprep.subr.mxu0 0.0
    %575 = vmatpush1.msra.mxu0 0.0
    %576 = vmatprep.subr.mxu0 0.0
    %577 = vmatpush1.msra.mxu0 0.0
    %578 = vmatprep.mubr.f32.mxu0 0.0
    %579 = vmatmul.mubr.f32.gmra.mrb[0].mxu0 %v490
    %v580 = vpop.f32.mrb[0].mxu0
    %v581 = vadd.f32 %v512, %v580
    %v582 = vpop.f32.mrb[0].mxu0
    %583 = vdwg.mxu0
    %584 = vmax.xlane.f32.xlu0 %v581
    %v585 = vpop.xlane.xlu0 %584
    %v586 = vsub.f32 %v581, %v585
    %v587 = vmul.f32 %v586, 1.442695
    %v588 = vpow.pop %v587
    %589 = vadd.xlane.f32.xlu0 %v588
    %v590 = vpop.xlane.xlu0 %589
    %v591 = vrcp.pop %v590
    %v592 = vmul.f32 %v588, %v591
    %593 = vst [vmem:[#allocation13] sm:$0xff] %v592
    // Predicated region
    $region70: #{tpu_custom_call.1} parent=1 // pred_check
      _
    $region71: #{tpu_custom_call.1} parent=1 // pred_check_branch
      %595 = sbr.rel (0) target = $region73
    $region72: #{tpu_custom_call.1} parent=1 // pred_region
      %s597 = ssub.s32 128, 128
      %598 = vsyncadd [#allocation4], %s597
      %s600 = sshll.u32 [#allocation13], 4
      %s601 = int_to_ptr.vmem [resolvable:$true] %s600
      %603 = dma.vmem_to_hbm [thread:$0]  %s601, 128, %s11, [#allocation4]
    $region73: #{tpu_custom_call.1} parent=1 // pred_fallthru
      _
    // Predicated region
    $region74: #{tpu_custom_call.1} parent=1 // pred_check
      _
    $region75: #{tpu_custom_call.1} parent=1 // pred_check_branch
      %605 = sbr.rel (0) target = $region77
    $region76: #{tpu_custom_call.1} parent=1 // pred_region
      %606 = dma.done [#allocation4], 128
    $region77: #{tpu_custom_call.1} parent=1 // pred_fallthru
      _
    %607 = vsyncpa [#allocation3], 1
    %608 = vsyncpa [#allocation6], 1
    %609 = vsyncpa [#allocation9], 1
    %610 = vsyncpa [#allocation12], 1
    %611 = vsyncpa [#allocation4], 1

</llo_original>
